<compile_context>
chip_gen: v5e
topology: v5e:2x2
jax: 0.10.0
libtpu: 0.0.40
codegen_flags: <defaults>
</compile_context>

<pallas_src>
import jax
import jax.numpy as jnp
from jax.experimental import pallas as pl
from jax.experimental.pallas import tpu as pltpu

BN_EPS = 1e-5
LEAKY_SLOPE = 0.01

H1, H2 = 500, 250            # logical hidden dims (PyTorch module)
H1P, H2P = 512, 256          # padded hidden dims (multiples of 128)
OUT_PAD = 128                # lane-dense output slab width (only column 0 is real)
TB = 128                     # batch tile per grid step


def _leaky_relu(x):
    return jnp.where(x > 0, x, LEAKY_SLOPE * x)


def mlp_kernel(x_ref, w1_ref, b1_ref, w2_ref, b2_ref, w3_ref, b3_ref, o_ref):
    # BN folded into (w, b); dropout is identity in eval. The whole forward is
    # three bf16 matmuls with f32 accumulation plus a small f32 epilogue.
    x = x_ref[...]                                                   # bf16 [TB, F]

    h = jnp.dot(x, w1_ref[...], preferred_element_type=jnp.float32) + b1_ref[...]
    h = _leaky_relu(h)                                               # f32 [TB, 512]

    h = jnp.dot(h.astype(jnp.bfloat16), w2_ref[...],
                preferred_element_type=jnp.float32) + b2_ref[...]
    h = _leaky_relu(h)                                               # f32 [TB, 256]

    logits = jnp.dot(h.astype(jnp.bfloat16), w3_ref[...],
                     preferred_element_type=jnp.float32) + b3_ref[...]

    # sigmoid: exp goes to the EUP; approx reciprocal keeps the divide off VALU.
    o_ref[...] = pl.reciprocal(1.0 + jnp.exp(-logits), approx=True)


@jax.jit
def binary_classifier_forward(x, params):
    """x: [batch, input_size] f32.  params: folded/padded arrays from init_params."""
    b, f = x.shape
    bp = pl.cdiv(b, TB) * TB
    x_pad = jnp.pad(x.astype(jnp.bfloat16), ((0, bp - b), (0, 0)))

    def weight_spec(shape):
        # Constant index_map -> block never changes across grid steps (weights
        # stay VMEM-resident; no per-step re-fetch).
        return pl.BlockSpec(shape, lambda i: (0, 0))

    out = pl.pallas_call(
        mlp_kernel,
        out_shape=jax.ShapeDtypeStruct((bp, OUT_PAD), jnp.float32),
        grid_spec=pltpu.PrefetchScalarGridSpec(
            num_scalar_prefetch=0,
            grid=(bp // TB,),
            in_specs=[
                pl.BlockSpec((TB, f), lambda i: (i, 0)),   # x batch tile
                weight_spec((f, H1P)),                     # w1 (BN-folded, bf16)
                weight_spec((1, H1P)),                     # b1 (BN-folded, f32)
                weight_spec((H1P, H2P)),                   # w2 (BN-folded, bf16)
                weight_spec((1, H2P)),                     # b2 (BN-folded, f32)
                weight_spec((H2P, OUT_PAD)),               # w3 (lane-dense pad, bf16)
                weight_spec((1, OUT_PAD)),                 # b3 (f32)
            ],
            out_specs=pl.BlockSpec((TB, OUT_PAD), lambda i: (i, 0)),
        ),
        compiler_params=pltpu.CompilerParams(
            # Independent batch tiles -> sharded across v7x's 2 TensorCores.
            dimension_semantics=("parallel",),
            # Headroom for real-world input_size (weights are bf16 so this is
            # generous; for very large input_size, tile K of fc1 instead).
            vmem_limit_bytes=64 * 1024 * 1024,
        ),
    )(x_pad, params["w1"], params["b1"], params["w2"], params["b2"],
      params["w3"], params["b3"])

    return out[:b, :1]


def init_params(key, input_size):
    """PyTorch-style init, then BN folding + TPU padding + bf16 weight cast."""
    ks = jax.random.split(key, 12)

    def linear(kw, kb, fan_in, fan_out):
        bound = 1.0 / jnp.sqrt(fan_in)
        w = jax.random.uniform(kw, (fan_in, fan_out), jnp.float32, -bound, bound)
        b = jax.random.uniform(kb, (1, fan_out), jnp.float32, -bound, bound)
        return w, b

    w1, b1 = linear(ks[0], ks[1], input_size, H1)
    w2, b2 = linear(ks[2], ks[3], H1, H2)
    w3, b3 = linear(ks[4], ks[5], H2, 1)

    # BatchNorm running stats / affine (non-trivial to exercise the math).
    g1 = jax.random.uniform(ks[6], (1, H1), jnp.float32, 0.5, 1.5)
    be1 = jax.random.uniform(ks[7], (1, H1), jnp.float32, -0.5, 0.5)
    m1 = jax.random.uniform(ks[8], (1, H1), jnp.float32, -0.5, 0.5)
    v1 = jax.random.uniform(ks[9], (1, H1), jnp.float32, 0.5, 1.5)
    g2 = jax.random.uniform(ks[10], (1, H2), jnp.float32, 0.5, 1.5)
    be2 = jnp.zeros((1, H2), jnp.float32)
    m2 = jax.random.uniform(ks[11], (1, H2), jnp.float32, -0.5, 0.5)
    v2 = jnp.ones((1, H2), jnp.float32)

    # ---- fold BatchNorm (inference affine) into the preceding Linear ----
    s1 = g1 * jax.lax.rsqrt(v1 + BN_EPS)            # (1, H1)
    w1f = w1 * s1
    b1f = (b1 - m1) * s1 + be1
    s2 = g2 * jax.lax.rsqrt(v2 + BN_EPS)            # (1, H2)
    w2f = w2 * s2
    b2f = (b2 - m2) * s2 + be2

    def pad_to(a, rows, cols):
        return jnp.pad(a, ((0, rows - a.shape[0]), (0, cols - a.shape[1])))

    params = {
        "w1": pad_to(w1f, input_size, H1P).astype(jnp.bfloat16),
        "b1": pad_to(b1f, 1, H1P),
        "w2": pad_to(w2f, H1P, H2P).astype(jnp.bfloat16),
        "b2": pad_to(b2f, 1, H2P),
        "w3": pad_to(w3, H2P, OUT_PAD).astype(jnp.bfloat16),
        "b3": pad_to(b3, 1, OUT_PAD),
    }
    # Unpadded, unfolded copies for the pure-JAX f32 reference.
    ref = dict(w1=w1, b1=b1, g1=g1, be1=be1, m1=m1, v1=v1,
               w2=w2, b2=b2, g2=g2, be2=be2, m2=m2, v2=v2,
               w3=w3, b3=b3)
    return params, ref


def reference_forward(x, p):
    h = x @ p["w1"] + p["b1"]
    h = (h - p["m1"]) * (p["g1"] / jnp.sqrt(p["v1"] + BN_EPS)) + p["be1"]
    h = jnp.where(h > 0, h, LEAKY_SLOPE * h)
    h = h @ p["w2"] + p["b2"]
    h = (h - p["m2"]) * (p["g2"] / jnp.sqrt(p["v2"] + BN_EPS)) + p["be2"]
    h = jnp.where(h > 0, h, LEAKY_SLOPE * h)
    h = h @ p["w3"] + p["b3"]
    return jax.nn.sigmoid(h)


if __name__ == "__main__":
    INPUT_SIZE = 32   # stand-in for X.shape[1]
    BATCH = 8

    key = jax.random.PRNGKey(0)
    k_x, k_p = jax.random.split(key)
    x = jax.random.normal(k_x, (BATCH, INPUT_SIZE), jnp.float32)

    params, ref_params = init_params(k_p, INPUT_SIZE)

    out = binary_classifier_forward(x, params)
    out = jax.block_until_ready(out)

    expected = reference_forward(x, ref_params)
    assert out.shape == (BATCH, 1)
    # Tolerance is loose because the kernel uses bf16 weights/activations on the
    # MXU (f32 accumulation) and an approximate EUP reciprocal for the sigmoid.
    max_err = jnp.max(jnp.abs(out - expected))
    assert jnp.all(jnp.abs(out - expected) < 2e-2), f"mismatch: max abs err {max_err}"
    print("KERNEL_OK")
</pallas_src>

<mosaic_0001>
module attributes {stable_mosaic.version = 11 : i64} {
  func.func @mlp_kernel(%arg0: i32, %arg1: memref<128x32xbf16, #tpu.memory_space<vmem>>, %arg2: memref<32x512xbf16, #tpu.memory_space<vmem>>, %arg3: memref<1x512xf32, #tpu.memory_space<vmem>>, %arg4: memref<512x256xbf16, #tpu.memory_space<vmem>>, %arg5: memref<1x256xf32, #tpu.memory_space<vmem>>, %arg6: memref<256x128xbf16, #tpu.memory_space<vmem>>, %arg7: memref<1x128xf32, #tpu.memory_space<vmem>>, %arg8: memref<128x128xf32, #tpu.memory_space<vmem>>) attributes {dimension_semantics = [#tpu.dimension_semantics<parallel>], iteration_bounds = array<i64: 1>, scalar_prefetch = 0 : i64, scratch_operands = 0 : i64, tpu.core_type = #tpu.core_type<tc>, window_params = [{transform_indices = @transform_0, window_bounds = array<i64: 128, 32>}, {pipeline_mode = #tpu.pipeline_mode<synchronous>, transform_indices = @transform_1, window_bounds = array<i64: 32, 512>}, {pipeline_mode = #tpu.pipeline_mode<synchronous>, transform_indices = @transform_2, window_bounds = array<i64: 1, 512>}, {pipeline_mode = #tpu.pipeline_mode<synchronous>, transform_indices = @transform_3, window_bounds = array<i64: 512, 256>}, {pipeline_mode = #tpu.pipeline_mode<synchronous>, transform_indices = @transform_4, window_bounds = array<i64: 1, 256>}, {pipeline_mode = #tpu.pipeline_mode<synchronous>, transform_indices = @transform_5, window_bounds = array<i64: 256, 128>}, {pipeline_mode = #tpu.pipeline_mode<synchronous>, transform_indices = @transform_6, window_bounds = array<i64: 1, 128>}, {transform_indices = @transform_7, window_bounds = array<i64: 128, 128>}]} {
    %c0 = arith.constant 0 : index
    %c0_0 = arith.constant 0 : index
    %0 = vector.load %arg1[%c0, %c0_0] : memref<128x32xbf16, #tpu.memory_space<vmem>>, vector<128x32xbf16>
    %c0_1 = arith.constant 0 : index
    %c0_2 = arith.constant 0 : index
    %1 = vector.load %arg2[%c0_1, %c0_2] : memref<32x512xbf16, #tpu.memory_space<vmem>>, vector<32x512xbf16>
    %cst = arith.constant dense<0.000000e+00> : vector<128x512xf32>
    %2 = tpu.matmul %0, %1, %cst {dimension_numbers = #tpu.dot_dimension_numbers<[1], [0], [0], [1], [0, 0, 1, 1], [], []>} : vector<128x32xbf16>, vector<32x512xbf16>, vector<128x512xf32> -> vector<128x512xf32>
    %c0_3 = arith.constant 0 : index
    %c0_4 = arith.constant 0 : index
    %3 = vector.load %arg3[%c0_3, %c0_4] : memref<1x512xf32, #tpu.memory_space<vmem>>, vector<1x512xf32>
    %4 = vector.broadcast %3 : vector<1x512xf32> to vector<128x512xf32>
    %5 = arith.addf %2, %4 : vector<128x512xf32>
    %cst_5 = arith.constant 0.000000e+00 : f32
    %6 = vector.broadcast %cst_5 : f32 to vector<128x512xf32>
    %7 = arith.cmpf ogt, %5, %6 : vector<128x512xf32>
    %cst_6 = arith.constant 0.00999999977 : f32
    %8 = vector.broadcast %cst_6 : f32 to vector<128x512xf32>
    %9 = arith.mulf %8, %5 : vector<128x512xf32>
    %10 = arith.select %7, %5, %9 : vector<128x512xi1>, vector<128x512xf32>
    %11 = arith.truncf %10 : vector<128x512xf32> to vector<128x512xbf16>
    %c0_7 = arith.constant 0 : index
    %c0_8 = arith.constant 0 : index
    %12 = vector.load %arg4[%c0_7, %c0_8] : memref<512x256xbf16, #tpu.memory_space<vmem>>, vector<512x256xbf16>
    %cst_9 = arith.constant dense<0.000000e+00> : vector<128x256xf32>
    %13 = tpu.matmul %11, %12, %cst_9 {dimension_numbers = #tpu.dot_dimension_numbers<[1], [0], [0], [1], [0, 0, 1, 1], [], []>} : vector<128x512xbf16>, vector<512x256xbf16>, vector<128x256xf32> -> vector<128x256xf32>
    %c0_10 = arith.constant 0 : index
    %c0_11 = arith.constant 0 : index
    %14 = vector.load %arg5[%c0_10, %c0_11] : memref<1x256xf32, #tpu.memory_space<vmem>>, vector<1x256xf32>
    %15 = vector.broadcast %14 : vector<1x256xf32> to vector<128x256xf32>
    %16 = arith.addf %13, %15 : vector<128x256xf32>
    %cst_12 = arith.constant 0.000000e+00 : f32
    %17 = vector.broadcast %cst_12 : f32 to vector<128x256xf32>
    %18 = arith.cmpf ogt, %16, %17 : vector<128x256xf32>
    %cst_13 = arith.constant 0.00999999977 : f32
    %19 = vector.broadcast %cst_13 : f32 to vector<128x256xf32>
    %20 = arith.mulf %19, %16 : vector<128x256xf32>
    %21 = arith.select %18, %16, %20 : vector<128x256xi1>, vector<128x256xf32>
    %22 = arith.truncf %21 : vector<128x256xf32> to vector<128x256xbf16>
    %c0_14 = arith.constant 0 : index
    %c0_15 = arith.constant 0 : index
    %23 = vector.load %arg6[%c0_14, %c0_15] : memref<256x128xbf16, #tpu.memory_space<vmem>>, vector<256x128xbf16>
    %cst_16 = arith.constant dense<0.000000e+00> : vector<128x128xf32>
    %24 = tpu.matmul %22, %23, %cst_16 {dimension_numbers = #tpu.dot_dimension_numbers<[1], [0], [0], [1], [0, 0, 1, 1], [], []>} : vector<128x256xbf16>, vector<256x128xbf16>, vector<128x128xf32> -> vector<128x128xf32>
    %c0_17 = arith.constant 0 : index
    %c0_18 = arith.constant 0 : index
    %25 = vector.load %arg7[%c0_17, %c0_18] : memref<1x128xf32, #tpu.memory_space<vmem>>, vector<1x128xf32>
    %26 = vector.broadcast %25 : vector<1x128xf32> to vector<128x128xf32>
    %27 = arith.addf %24, %26 : vector<128x128xf32>
    %cst_19 = arith.constant 0.000000e+00 : f32
    %28 = vector.broadcast %cst_19 : f32 to vector<128x128xf32>
    %29 = arith.subf %28, %27 : vector<128x128xf32>
    %30 = math.exp %29 : vector<128x128xf32>
    %cst_20 = arith.constant 1.000000e+00 : f32
    %31 = vector.broadcast %cst_20 : f32 to vector<128x128xf32>
    %32 = arith.addf %31, %30 : vector<128x128xf32>
    %33 = tpu.reciprocal %32 {approx = true} : vector<128x128xf32> -> vector<128x128xf32>
    %c0_21 = arith.constant 0 : index
    %c0_22 = arith.constant 0 : index
    %34 = vector.load %arg8[%c0_21, %c0_22] : memref<128x128xf32, #tpu.memory_space<vmem>>, vector<128x128xf32>
    tpu.vector_store %arg8[%c0_21, %c0_22], %33 {strides = array<i32>} : memref<128x128xf32, #tpu.memory_space<vmem>>, vector<128x128xf32>,
    return
  }
  func.func @transform_0(%arg0: i32) -> (i32, i32) {
    %c0_i32 = arith.constant 0 : i32
    %c0_i32_0 = arith.constant 0 : i32
    return %arg0, %c0_i32 : i32, i32
  }
  func.func @transform_1(%arg0: i32) -> (i32, i32) {
    %c0_i32 = arith.constant 0 : i32
    %c0_i32_0 = arith.constant 0 : i32
    %c0_i32_1 = arith.constant 0 : i32
    return %c0_i32, %c0_i32_0 : i32, i32
  }
  func.func @transform_2(%arg0: i32) -> (i32, i32) {
    %c0_i32 = arith.constant 0 : i32
    %c0_i32_0 = arith.constant 0 : i32
    %c0_i32_1 = arith.constant 0 : i32
    return %c0_i32, %c0_i32_0 : i32, i32
  }
  func.func @transform_3(%arg0: i32) -> (i32, i32) {
    %c0_i32 = arith.constant 0 : i32
    %c0_i32_0 = arith.constant 0 : i32
    %c0_i32_1 = arith.constant 0 : i32
    return %c0_i32, %c0_i32_0 : i32, i32
  }
  func.func @transform_4(%arg0: i32) -> (i32, i32) {
    %c0_i32 = arith.constant 0 : i32
    %c0_i32_0 = arith.constant 0 : i32
    %c0_i32_1 = arith.constant 0 : i32
    return %c0_i32, %c0_i32_0 : i32, i32
  }
  func.func @transform_5(%arg0: i32) -> (i32, i32) {
    %c0_i32 = arith.constant 0 : i32
    %c0_i32_0 = arith.constant 0 : i32
    %c0_i32_1 = arith.constant 0 : i32
    return %c0_i32, %c0_i32_0 : i32, i32
  }
  func.func @transform_6(%arg0: i32) -> (i32, i32) {
    %c0_i32 = arith.constant 0 : i32
    %c0_i32_0 = arith.constant 0 : i32
    %c0_i32_1 = arith.constant 0 : i32
    return %c0_i32, %c0_i32_0 : i32, i32
  }
  func.func @transform_7(%arg0: i32) -> (i32, i32) {
    %c0_i32 = arith.constant 0 : i32
    %c0_i32_0 = arith.constant 0 : i32
    return %arg0, %c0_i32 : i32, i32
  }
}

</mosaic_0001>

<llo_original>
// kernel: binary_classifier_forward.1
$region0: #{binary_classifier_forward.1}
  #allocation0 [shape = 'u32[]', space=smem, size = 0x4, offset = 0x4, fixed_abs, tag = 'smem constant byte address 0x4 - core index']
  #allocation1 [shape = 'u32[72,128]{1,0:T(1,128)}', space=vmem, size = 0x9000, scoped, tag = 'internal scratch']
  %s0 = inlined_call_operand.vmem [shape: bf16[128,32], index: 0, kind: input, shape index: {}]
  %s1 = inlined_call_operand.vmem [shape: bf16[32,512], index: 1, kind: input, shape index: {}]
  %s2 = inlined_call_operand.vmem [shape: f32[1,512], index: 2, kind: input, shape index: {}]
  %s3 = inlined_call_operand.hbm [shape: bf16[512,256], index: 3, kind: input, shape index: {}]
  %s4 = inlined_call_operand.vmem [shape: f32[1,256], index: 4, kind: input, shape index: {}]
  %s5 = inlined_call_operand.hbm [shape: bf16[256,128], index: 5, kind: input, shape index: {}]
  %s6 = inlined_call_operand.vmem [shape: f32[1,128], index: 6, kind: input, shape index: {}]
  %s7 = inlined_call_operand.vmem [shape: f32[128,128], index: 7, kind: output, shape index: {}]
  %s8 = sld [smem:[#allocation0]]
  $region46: #{binary_classifier_forward.1} parent=0
    _
  %s10 = ssub.s32 1, %s8
  %s11 = scalar_select 0, %s10, %s8
  $region1: #{binary_classifier_forward.1} parent=0
    #allocation2 [shape = 'u8[262144]{0}', space=vmem, size = 0x40000, scoped, tag = 'input window, operand 3, single buffered']
    #allocation3 [shape = 's32[1]{0}', space=sflag, size = 0x4, scoped, tag = 'scoped memory for binary_classifier_forward.1']
    #allocation4 [shape = 'u8[65536]{0}', space=vmem, size = 0x10000, scoped, tag = 'input window, operand 5, single buffered']
    #allocation5 [shape = 's32[1]{0}', space=sflag, size = 0x4, scoped, tag = 'scoped memory for binary_classifier_forward.1']
    %12 = vsyncpa [#allocation3], 0
    %13 = vsyncpa [#allocation5], 0
    // Predicated region
    $region2: #{binary_classifier_forward.1} parent=1 // pred_check
      _
    $region3: #{binary_classifier_forward.1} parent=1 // pred_check_branch
      %15 = sbr.rel (0) target = $region5
    $region4: #{binary_classifier_forward.1} parent=1 // pred_region
      _
    $region5: #{binary_classifier_forward.1} parent=1 // pred_fallthru
      _
    // Predicated region
    $region6: #{binary_classifier_forward.1} parent=1 // pred_check
      _
    $region7: #{binary_classifier_forward.1} parent=1 // pred_check_branch
      %17 = sbr.rel (0) target = $region9
    $region8: #{binary_classifier_forward.1} parent=1 // pred_region
      _
    $region9: #{binary_classifier_forward.1} parent=1 // pred_fallthru
      _
    // Predicated region
    $region10: #{binary_classifier_forward.1} parent=1 // pred_check
      _
    $region11: #{binary_classifier_forward.1} parent=1 // pred_check_branch
      %19 = sbr.rel (0) target = $region13
    $region12: #{binary_classifier_forward.1} parent=1 // pred_region
      _
    $region13: #{binary_classifier_forward.1} parent=1 // pred_fallthru
      _
    // Predicated region
    $region14: #{binary_classifier_forward.1} parent=1 // pred_check
      _
    $region15: #{binary_classifier_forward.1} parent=1 // pred_check_branch
      %21 = sbr.rel (0) target = $region17
    $region16: #{binary_classifier_forward.1} parent=1 // pred_region
      %23 = vsyncadd [#allocation3], 0
      %s24 = sshll.u32 %s3, 4
      %s25 = int_to_ptr.hbm [resolvable:$true] %s24
      %s26 = sshll.u32 [#allocation2], 4
      %s27 = int_to_ptr.vmem [resolvable:$true] %s26
      %32 = dma.hbm_to_vmem [thread:$0]  %s25, 8192, %s27, [#allocation3], 128, 128, 8
    $region17: #{binary_classifier_forward.1} parent=1 // pred_fallthru
      _
    // Predicated region
    $region18: #{binary_classifier_forward.1} parent=1 // pred_check
      _
    $region19: #{binary_classifier_forward.1} parent=1 // pred_check_branch
      %34 = sbr.rel (0) target = $region21
    $region20: #{binary_classifier_forward.1} parent=1 // pred_region
      _
    $region21: #{binary_classifier_forward.1} parent=1 // pred_fallthru
      _
    // Predicated region
    $region22: #{binary_classifier_forward.1} parent=1 // pred_check
      _
    $region23: #{binary_classifier_forward.1} parent=1 // pred_check_branch
      %36 = sbr.rel (0) target = $region25
    $region24: #{binary_classifier_forward.1} parent=1 // pred_region
      %38 = vsyncadd [#allocation5], 0
      %s39 = sshll.u32 %s5, 4
      %s40 = int_to_ptr.hbm [resolvable:$true] %s39
      %s41 = sshll.u32 [#allocation4], 4
      %s42 = int_to_ptr.vmem [resolvable:$true] %s41
      %47 = dma.hbm_to_vmem [thread:$0]  %s40, 2048, %s42, [#allocation5], 64, 64, 4
    $region25: #{binary_classifier_forward.1} parent=1 // pred_fallthru
      _
    // Predicated region
    $region26: #{binary_classifier_forward.1} parent=1 // pred_check
      _
    $region27: #{binary_classifier_forward.1} parent=1 // pred_check_branch
      %49 = sbr.rel (0) target = $region29
    $region28: #{binary_classifier_forward.1} parent=1 // pred_region
      _
    $region29: #{binary_classifier_forward.1} parent=1 // pred_fallthru
      _
    // Predicated region
    $region30: #{binary_classifier_forward.1} parent=1 // pred_check
      _
    $region31: #{binary_classifier_forward.1} parent=1 // pred_check_branch
      %51 = sbr.rel (0) target = $region33
    $region32: #{binary_classifier_forward.1} parent=1 // pred_region
      %53 = dma.done [#allocation3], 8192
    $region33: #{binary_classifier_forward.1} parent=1 // pred_fallthru
      _
    // Predicated region
    $region34: #{binary_classifier_forward.1} parent=1 // pred_check
      _
    $region35: #{binary_classifier_forward.1} parent=1 // pred_check_branch
      %55 = sbr.rel (0) target = $region37
    $region36: #{binary_classifier_forward.1} parent=1 // pred_region
      %57 = dma.done [#allocation5], 2048
    $region37: #{binary_classifier_forward.1} parent=1 // pred_fallthru
      _
    %v59 = vld [vmem:[%s0] sm:$0xf]
    %v60 = vld [vmem:[%s0 + $0x4] sm:$0xf]
    %v61 = vld [vmem:[%s0 + $0x8] sm:$0xf]
    %v62 = vld [vmem:[%s0 + $0xc] sm:$0xf]
    %v63 = vld [vmem:[%s0 + $0x10] sm:$0xf]
    %v64 = vld [vmem:[%s0 + $0x14] sm:$0xf]
    %v65 = vld [vmem:[%s0 + $0x18] sm:$0xf]
    %v66 = vld [vmem:[%s0 + $0x1c] sm:$0xf]
    %v67 = vld [vmem:[%s0 + $0x20] sm:$0xf]
    %v68 = vld [vmem:[%s0 + $0x24] sm:$0xf]
    %v69 = vld [vmem:[%s0 + $0x28] sm:$0xf]
    %v70 = vld [vmem:[%s0 + $0x2c] sm:$0xf]
    %v71 = vld [vmem:[%s0 + $0x30] sm:$0xf]
    %v72 = vld [vmem:[%s0 + $0x34] sm:$0xf]
    %v73 = vld [vmem:[%s0 + $0x38] sm:$0xf]
    %v74 = vld [vmem:[%s0 + $0x3c] sm:$0xf]
    %v75 = vld [vmem:[%s1] sm:$0xff]
    %v76 = vld [vmem:[%s1 + $0x8] sm:$0xff]
    %v77 = vld [vmem:[%s1 + $0x10] sm:$0xff]
    %v78 = vld [vmem:[%s1 + $0x18] sm:$0xff]
    %v79 = vld [vmem:[%s1 + $0x20] sm:$0xff]
    %v80 = vld [vmem:[%s1 + $0x28] sm:$0xff]
    %v81 = vld [vmem:[%s1 + $0x30] sm:$0xff]
    %v82 = vld [vmem:[%s1 + $0x38] sm:$0xff]
    %v83 = vld [vmem:[%s2] sm:$0xf]
    %v85 = vperm.slane %v83, 0
    %v86 = vperm.slane %v83, 1
    %v87 = vperm.slane %v83, 2
    %v88 = vperm.slane %v83, 3
    %v109 = vunpack.c.l.b16 %v59
    %v110 = vunpack.c.l.b16 %v60
    %v111 = vunpack.c.l.b16 %v61
    %v112 = vunpack.c.l.b16 %v62
    %v113 = vunpack.c.l.b16 %v63
    %v114 = vunpack.c.l.b16 %v64
    %v115 = vunpack.c.l.b16 %v65
    %v116 = vunpack.c.l.b16 %v66
    %v117 = vunpack.c.l.b16 %v67
    %v118 = vunpack.c.l.b16 %v68
    %v119 = vunpack.c.l.b16 %v69
    %v120 = vunpack.c.l.b16 %v70
    %v121 = vunpack.c.l.b16 %v71
    %v122 = vunpack.c.l.b16 %v72
    %v123 = vunpack.c.l.b16 %v73
    %v124 = vunpack.c.l.b16 %v74
    %v125 = vpack.c.b16 %v110, %v109
    %v126 = vpack.c.b16 %v112, %v111
    %v127 = vpack.c.b16 %v114, %v113
    %v128 = vpack.c.b16 %v116, %v115
    %v129 = vpack.c.b16 %v118, %v117
    %v130 = vpack.c.b16 %v120, %v119
    %v131 = vpack.c.b16 %v122, %v121
    %v132 = vpack.c.b16 %v124, %v123
    %v141 = vunpack.c.l.b16 %v75
    %v142 = vunpack.c.h.b16 %v75
    %v143 = vunpack.c.l.b16 %v76
    %v144 = vunpack.c.h.b16 %v76
    %v145 = vunpack.c.l.b16 %v77
    %v146 = vunpack.c.h.b16 %v77
    %v147 = vunpack.c.l.b16 %v78
    %v148 = vunpack.c.h.b16 %v78
    %v149 = vunpack.c.l.b16 %v79
    %v150 = vunpack.c.h.b16 %v79
    %v151 = vunpack.c.l.b16 %v80
    %v152 = vunpack.c.h.b16 %v80
    %v153 = vunpack.c.l.b16 %v81
    %v154 = vunpack.c.h.b16 %v81
    %v155 = vunpack.c.l.b16 %v82
    %v156 = vunpack.c.h.b16 %v82
    %v157 = vpack.c.b16 %v145, %v141
    %v158 = vpack.c.b16 %v146, %v142
    %v159 = vpack.c.b16 %v147, %v143
    %v160 = vpack.c.b16 %v148, %v144
    %v161 = vpack.c.b16 %v153, %v149
    %v162 = vpack.c.b16 %v154, %v150
    %v163 = vpack.c.b16 %v155, %v151
    %v164 = vpack.c.b16 %v156, %v152
    %vm173 = vcmask 261120
    %v175 = vsel %vm173, %v125, 0
    %v178 = vsel %vm173, %v126, 0
    %v181 = vsel %vm173, %v127, 0
    %v184 = vsel %vm173, %v128, 0
    %v187 = vsel %vm173, %v129, 0
    %v190 = vsel %vm173, %v130, 0
    %v193 = vsel %vm173, %v131, 0
    %v196 = vsel %vm173, %v132, 0
    %198 = vmatpush.bf16.msra.mxu0 0
    %199 = vmatpush.bf16.msra.mxu0 0
    %200 = vmatpush.bf16.msra.mxu0 0
    %201 = vmatpush.bf16.msra.mxu0 0
    %202 = vmatpush.bf16.msra.mxu0 0
    %203 = vmatpush.bf16.msra.mxu0 0
    %204 = vmatpush.bf16.msra.mxu0 %v161
    %205 = vmatpush.bf16.msra.mxu0 %v157
    %206 = vmatmul.bf16.gmra.mxu0 %v175
    %v207 = vpop.f32.mrf.mxu0
    %v208 = vadd.f32 %v85, %v207
    %v209 = vpop.f32.mrf.mxu0
    %v210 = vadd.f32 %v85, %v209
    %211 = vmatmul.bf16.gmra.mxu0 %v178
    %v212 = vpop.f32.mrf.mxu0
    %v213 = vadd.f32 %v85, %v212
    %v214 = vpop.f32.mrf.mxu0
    %v215 = vadd.f32 %v85, %v214
    %216 = vmatmul.bf16.gmra.mxu0 %v181
    %v217 = vpop.f32.mrf.mxu0
    %v218 = vadd.f32 %v85, %v217
    %v219 = vpop.f32.mrf.mxu0
    %v220 = vadd.f32 %v85, %v219
    %221 = vmatmul.bf16.gmra.mxu0 %v184
    %v222 = vpop.f32.mrf.mxu0
    %v223 = vadd.f32 %v85, %v222
    %v224 = vpop.f32.mrf.mxu0
    %v225 = vadd.f32 %v85, %v224
    %226 = vmatmul.bf16.gmra.mxu0 %v187
    %v227 = vpop.f32.mrf.mxu0
    %v228 = vadd.f32 %v85, %v227
    %v229 = vpop.f32.mrf.mxu0
    %v230 = vadd.f32 %v85, %v229
    %231 = vmatmul.bf16.gmra.mxu0 %v190
    %v232 = vpop.f32.mrf.mxu0
    %v233 = vadd.f32 %v85, %v232
    %v234 = vpop.f32.mrf.mxu0
    %v235 = vadd.f32 %v85, %v234
    %236 = vmatmul.bf16.gmra.mxu0 %v193
    %v237 = vpop.f32.mrf.mxu0
    %v238 = vadd.f32 %v85, %v237
    %v239 = vpop.f32.mrf.mxu0
    %v240 = vadd.f32 %v85, %v239
    %241 = vmatmul.bf16.gmra.mxu0 %v196
    %v242 = vpop.f32.mrf.mxu0
    %v243 = vadd.f32 %v85, %v242
    %v244 = vpop.f32.mrf.mxu0
    %v245 = vadd.f32 %v85, %v244
    %246 = vdwg.mxu0
    %247 = vmatpush.bf16.msra.mxu0 0
    %248 = vmatpush.bf16.msra.mxu0 0
    %249 = vmatpush.bf16.msra.mxu0 0
    %250 = vmatpush.bf16.msra.mxu0 0
    %251 = vmatpush.bf16.msra.mxu0 0
    %252 = vmatpush.bf16.msra.mxu0 0
    %253 = vmatpush.bf16.msra.mxu0 %v162
    %254 = vmatpush.bf16.msra.mxu0 %v158
    %255 = vmatmul.bf16.gmra.mxu0 %v175
    %v256 = vpop.f32.mrf.mxu0
    %v257 = vadd.f32 %v86, %v256
    %v258 = vpop.f32.mrf.mxu0
    %v259 = vadd.f32 %v86, %v258
    %260 = vmatmul.bf16.gmra.mxu0 %v178
    %v261 = vpop.f32.mrf.mxu0
    %v262 = vadd.f32 %v86, %v261
    %v263 = vpop.f32.mrf.mxu0
    %v264 = vadd.f32 %v86, %v263
    %265 = vmatmul.bf16.gmra.mxu0 %v181
    %v266 = vpop.f32.mrf.mxu0
    %v267 = vadd.f32 %v86, %v266
    %v268 = vpop.f32.mrf.mxu0
    %v269 = vadd.f32 %v86, %v268
    %270 = vmatmul.bf16.gmra.mxu0 %v184
    %v271 = vpop.f32.mrf.mxu0
    %v272 = vadd.f32 %v86, %v271
    %v273 = vpop.f32.mrf.mxu0
    %v274 = vadd.f32 %v86, %v273
    %275 = vmatmul.bf16.gmra.mxu0 %v187
    %v276 = vpop.f32.mrf.mxu0
    %v277 = vadd.f32 %v86, %v276
    %v278 = vpop.f32.mrf.mxu0
    %v279 = vadd.f32 %v86, %v278
    %280 = vmatmul.bf16.gmra.mxu0 %v190
    %v281 = vpop.f32.mrf.mxu0
    %v282 = vadd.f32 %v86, %v281
    %v283 = vpop.f32.mrf.mxu0
    %v284 = vadd.f32 %v86, %v283
    %285 = vmatmul.bf16.gmra.mxu0 %v193
    %v286 = vpop.f32.mrf.mxu0
    %v287 = vadd.f32 %v86, %v286
    %v288 = vpop.f32.mrf.mxu0
    %v289 = vadd.f32 %v86, %v288
    %290 = vmatmul.bf16.gmra.mxu0 %v196
    %v291 = vpop.f32.mrf.mxu0
    %v292 = vadd.f32 %v86, %v291
    %v293 = vpop.f32.mrf.mxu0
    %v294 = vadd.f32 %v86, %v293
    %295 = vdwg.mxu0
    %296 = vmatpush.bf16.msra.mxu0 0
    %297 = vmatpush.bf16.msra.mxu0 0
    %298 = vmatpush.bf16.msra.mxu0 0
    %299 = vmatpush.bf16.msra.mxu0 0
    %300 = vmatpush.bf16.msra.mxu0 0
    %301 = vmatpush.bf16.msra.mxu0 0
    %302 = vmatpush.bf16.msra.mxu0 %v163
    %303 = vmatpush.bf16.msra.mxu0 %v159
    %304 = vmatmul.bf16.gmra.mxu0 %v175
    %v305 = vpop.f32.mrf.mxu0
    %v306 = vadd.f32 %v87, %v305
    %v307 = vpop.f32.mrf.mxu0
    %v308 = vadd.f32 %v87, %v307
    %309 = vmatmul.bf16.gmra.mxu0 %v178
    %v310 = vpop.f32.mrf.mxu0
    %v311 = vadd.f32 %v87, %v310
    %v312 = vpop.f32.mrf.mxu0
    %v313 = vadd.f32 %v87, %v312
    %314 = vmatmul.bf16.gmra.mxu0 %v181
    %v315 = vpop.f32.mrf.mxu0
    %v316 = vadd.f32 %v87, %v315
    %v317 = vpop.f32.mrf.mxu0
    %v318 = vadd.f32 %v87, %v317
    %319 = vmatmul.bf16.gmra.mxu0 %v184
    %v320 = vpop.f32.mrf.mxu0
    %v321 = vadd.f32 %v87, %v320
    %v322 = vpop.f32.mrf.mxu0
    %v323 = vadd.f32 %v87, %v322
    %324 = vmatmul.bf16.gmra.mxu0 %v187
    %v325 = vpop.f32.mrf.mxu0
    %v326 = vadd.f32 %v87, %v325
    %v327 = vpop.f32.mrf.mxu0
    %v328 = vadd.f32 %v87, %v327
    %329 = vmatmul.bf16.gmra.mxu0 %v190
    %v330 = vpop.f32.mrf.mxu0
    %v331 = vadd.f32 %v87, %v330
    %v332 = vpop.f32.mrf.mxu0
    %v333 = vadd.f32 %v87, %v332
    %334 = vmatmul.bf16.gmra.mxu0 %v193
    %v335 = vpop.f32.mrf.mxu0
    %v336 = vadd.f32 %v87, %v335
    %v337 = vpop.f32.mrf.mxu0
    %v338 = vadd.f32 %v87, %v337
    %339 = vmatmul.bf16.gmra.mxu0 %v196
    %v340 = vpop.f32.mrf.mxu0
    %v341 = vadd.f32 %v87, %v340
    %v342 = vpop.f32.mrf.mxu0
    %v343 = vadd.f32 %v87, %v342
    %344 = vdwg.mxu0
    %345 = vmatpush.bf16.msra.mxu0 0
    %346 = vmatpush.bf16.msra.mxu0 0
    %347 = vmatpush.bf16.msra.mxu0 0
    %348 = vmatpush.bf16.msra.mxu0 0
    %349 = vmatpush.bf16.msra.mxu0 0
    %350 = vmatpush.bf16.msra.mxu0 0
    %351 = vmatpush.bf16.msra.mxu0 %v164
    %352 = vmatpush.bf16.msra.mxu0 %v160
    %353 = vmatmul.bf16.gmra.mxu0 %v175
    %v354 = vpop.f32.mrf.mxu0
    %v355 = vadd.f32 %v88, %v354
    %v356 = vpop.f32.mrf.mxu0
    %v357 = vadd.f32 %v88, %v356
    %358 = vmatmul.bf16.gmra.mxu0 %v178
    %v359 = vpop.f32.mrf.mxu0
    %v360 = vadd.f32 %v88, %v359
    %v361 = vpop.f32.mrf.mxu0
    %v362 = vadd.f32 %v88, %v361
    %363 = vmatmul.bf16.gmra.mxu0 %v181
    %v364 = vpop.f32.mrf.mxu0
    %v365 = vadd.f32 %v88, %v364
    %v366 = vpop.f32.mrf.mxu0
    %v367 = vadd.f32 %v88, %v366
    %368 = vmatmul.bf16.gmra.mxu0 %v184
    %v369 = vpop.f32.mrf.mxu0
    %v370 = vadd.f32 %v88, %v369
    %v371 = vpop.f32.mrf.mxu0
    %v372 = vadd.f32 %v88, %v371
    %373 = vmatmul.bf16.gmra.mxu0 %v187
    %v374 = vpop.f32.mrf.mxu0
    %v375 = vadd.f32 %v88, %v374
    %v376 = vpop.f32.mrf.mxu0
    %v377 = vadd.f32 %v88, %v376
    %378 = vmatmul.bf16.gmra.mxu0 %v190
    %v379 = vpop.f32.mrf.mxu0
    %v380 = vadd.f32 %v88, %v379
    %v381 = vpop.f32.mrf.mxu0
    %v382 = vadd.f32 %v88, %v381
    %383 = vmatmul.bf16.gmra.mxu0 %v193
    %v384 = vpop.f32.mrf.mxu0
    %v385 = vadd.f32 %v88, %v384
    %v386 = vpop.f32.mrf.mxu0
    %v387 = vadd.f32 %v88, %v386
    %388 = vmatmul.bf16.gmra.mxu0 %v196
    %v389 = vpop.f32.mrf.mxu0
    %v390 = vadd.f32 %v88, %v389
    %v391 = vpop.f32.mrf.mxu0
    %v392 = vadd.f32 %v88, %v391
    %393 = vdwg.mxu0
    %vm394 = vcmp.gt.f32.partialorder %v208, 0.0
    %vm395 = vcmp.gt.f32.partialorder %v257, 0.0
    %vm396 = vcmp.gt.f32.partialorder %v306, 0.0
    %vm397 = vcmp.gt.f32.partialorder %v355, 0.0
    %vm398 = vcmp.gt.f32.partialorder %v210, 0.0
    %vm399 = vcmp.gt.f32.partialorder %v259, 0.0
    %vm400 = vcmp.gt.f32.partialorder %v308, 0.0
    %vm401 = vcmp.gt.f32.partialorder %v357, 0.0
    %vm402 = vcmp.gt.f32.partialorder %v213, 0.0
    %vm403 = vcmp.gt.f32.partialorder %v262, 0.0
    %vm404 = vcmp.gt.f32.partialorder %v311, 0.0
    %vm405 = vcmp.gt.f32.partialorder %v360, 0.0
    %vm406 = vcmp.gt.f32.partialorder %v215, 0.0
    %vm407 = vcmp.gt.f32.partialorder %v264, 0.0
    %vm408 = vcmp.gt.f32.partialorder %v313, 0.0
    %vm409 = vcmp.gt.f32.partialorder %v362, 0.0
    %vm410 = vcmp.gt.f32.partialorder %v218, 0.0
    %vm411 = vcmp.gt.f32.partialorder %v267, 0.0
    %vm412 = vcmp.gt.f32.partialorder %v316, 0.0
    %vm413 = vcmp.gt.f32.partialorder %v365, 0.0
    %vm414 = vcmp.gt.f32.partialorder %v220, 0.0
    %vm415 = vcmp.gt.f32.partialorder %v269, 0.0
    %vm416 = vcmp.gt.f32.partialorder %v318, 0.0
    %vm417 = vcmp.gt.f32.partialorder %v367, 0.0
    %vm418 = vcmp.gt.f32.partialorder %v223, 0.0
    %vm419 = vcmp.gt.f32.partialorder %v272, 0.0
    %vm420 = vcmp.gt.f32.partialorder %v321, 0.0
    %vm421 = vcmp.gt.f32.partialorder %v370, 0.0
    %vm422 = vcmp.gt.f32.partialorder %v225, 0.0
    %vm423 = vcmp.gt.f32.partialorder %v274, 0.0
    %vm424 = vcmp.gt.f32.partialorder %v323, 0.0
    %vm425 = vcmp.gt.f32.partialorder %v372, 0.0
    %vm426 = vcmp.gt.f32.partialorder %v228, 0.0
    %vm427 = vcmp.gt.f32.partialorder %v277, 0.0
    %vm428 = vcmp.gt.f32.partialorder %v326, 0.0
    %vm429 = vcmp.gt.f32.partialorder %v375, 0.0
    %vm430 = vcmp.gt.f32.partialorder %v230, 0.0
    %vm431 = vcmp.gt.f32.partialorder %v279, 0.0
    %vm432 = vcmp.gt.f32.partialorder %v328, 0.0
    %vm433 = vcmp.gt.f32.partialorder %v377, 0.0
    %vm434 = vcmp.gt.f32.partialorder %v233, 0.0
    %vm435 = vcmp.gt.f32.partialorder %v282, 0.0
    %vm436 = vcmp.gt.f32.partialorder %v331, 0.0
    %vm437 = vcmp.gt.f32.partialorder %v380, 0.0
    %vm438 = vcmp.gt.f32.partialorder %v235, 0.0
    %vm439 = vcmp.gt.f32.partialorder %v284, 0.0
    %vm440 = vcmp.gt.f32.partialorder %v333, 0.0
    %vm441 = vcmp.gt.f32.partialorder %v382, 0.0
    %vm442 = vcmp.gt.f32.partialorder %v238, 0.0
    %vm443 = vcmp.gt.f32.partialorder %v287, 0.0
    %vm444 = vcmp.gt.f32.partialorder %v336, 0.0
    %vm445 = vcmp.gt.f32.partialorder %v385, 0.0
    %vm446 = vcmp.gt.f32.partialorder %v240, 0.0
    %vm447 = vcmp.gt.f32.partialorder %v289, 0.0
    %vm448 = vcmp.gt.f32.partialorder %v338, 0.0
    %vm449 = vcmp.gt.f32.partialorder %v387, 0.0
    %vm450 = vcmp.gt.f32.partialorder %v243, 0.0
    %vm451 = vcmp.gt.f32.partialorder %v292, 0.0
    %vm452 = vcmp.gt.f32.partialorder %v341, 0.0
    %vm453 = vcmp.gt.f32.partialorder %v390, 0.0
    %vm454 = vcmp.gt.f32.partialorder %v245, 0.0
    %vm455 = vcmp.gt.f32.partialorder %v294, 0.0
    %vm456 = vcmp.gt.f32.partialorder %v343, 0.0
    %vm457 = vcmp.gt.f32.partialorder %v392, 0.0
    %v458 = vmul.f32 %v208, 0.01
    %v459 = vmul.f32 %v257, 0.01
    %v460 = vmul.f32 %v306, 0.01
    %v461 = vmul.f32 %v355, 0.01
    %v462 = vmul.f32 %v210, 0.01
    %v463 = vmul.f32 %v259, 0.01
    %v464 = vmul.f32 %v308, 0.01
    %v465 = vmul.f32 %v357, 0.01
    %v466 = vmul.f32 %v213, 0.01
    %v467 = vmul.f32 %v262, 0.01
    %v468 = vmul.f32 %v311, 0.01
    %v469 = vmul.f32 %v360, 0.01
    %v470 = vmul.f32 %v215, 0.01
    %v471 = vmul.f32 %v264, 0.01
    %v472 = vmul.f32 %v313, 0.01
    %v473 = vmul.f32 %v362, 0.01
    %v474 = vmul.f32 %v218, 0.01
    %v475 = vmul.f32 %v267, 0.01
    %v476 = vmul.f32 %v316, 0.01
    %v477 = vmul.f32 %v365, 0.01
    %v478 = vmul.f32 %v220, 0.01
    %v479 = vmul.f32 %v269, 0.01
    %v480 = vmul.f32 %v318, 0.01
    %v481 = vmul.f32 %v367, 0.01
    %v482 = vmul.f32 %v223, 0.01
    %v483 = vmul.f32 %v272, 0.01
    %v484 = vmul.f32 %v321, 0.01
    %v485 = vmul.f32 %v370, 0.01
    %v486 = vmul.f32 %v225, 0.01
    %v487 = vmul.f32 %v274, 0.01
    %v488 = vmul.f32 %v323, 0.01
    %v489 = vmul.f32 %v372, 0.01
    %v490 = vmul.f32 %v228, 0.01
    %v491 = vmul.f32 %v277, 0.01
    %v492 = vmul.f32 %v326, 0.01
    %v493 = vmul.f32 %v375, 0.01
    %v494 = vmul.f32 %v230, 0.01
    %v495 = vmul.f32 %v279, 0.01
    %v496 = vmul.f32 %v328, 0.01
    %v497 = vmul.f32 %v377, 0.01
    %v498 = vmul.f32 %v233, 0.01
    %v499 = vmul.f32 %v282, 0.01
    %v500 = vmul.f32 %v331, 0.01
    %v501 = vmul.f32 %v380, 0.01
    %v502 = vmul.f32 %v235, 0.01
    %v503 = vmul.f32 %v284, 0.01
    %v504 = vmul.f32 %v333, 0.01
    %v505 = vmul.f32 %v382, 0.01
    %v506 = vmul.f32 %v238, 0.01
    %v507 = vmul.f32 %v287, 0.01
    %v508 = vmul.f32 %v336, 0.01
    %v509 = vmul.f32 %v385, 0.01
    %v510 = vmul.f32 %v240, 0.01
    %v511 = vmul.f32 %v289, 0.01
    %v512 = vmul.f32 %v338, 0.01
    %v513 = vmul.f32 %v387, 0.01
    %v514 = vmul.f32 %v243, 0.01
    %v515 = vmul.f32 %v292, 0.01
    %v516 = vmul.f32 %v341, 0.01
    %v517 = vmul.f32 %v390, 0.01
    %v518 = vmul.f32 %v245, 0.01
    %v519 = vmul.f32 %v294, 0.01
    %v520 = vmul.f32 %v343, 0.01
    %v521 = vmul.f32 %v392, 0.01
    %v522 = vsel %vm394, %v208, %v458
    %v523 = vsel %vm395, %v257, %v459
    %v524 = vsel %vm396, %v306, %v460
    %v525 = vsel %vm397, %v355, %v461
    %v526 = vsel %vm398, %v210, %v462
    %v527 = vsel %vm399, %v259, %v463
    %v528 = vsel %vm400, %v308, %v464
    %v529 = vsel %vm401, %v357, %v465
    %v530 = vsel %vm402, %v213, %v466
    %v531 = vsel %vm403, %v262, %v467
    %v532 = vsel %vm404, %v311, %v468
    %v533 = vsel %vm405, %v360, %v469
    %v534 = vsel %vm406, %v215, %v470
    %v535 = vsel %vm407, %v264, %v471
    %v536 = vsel %vm408, %v313, %v472
    %v537 = vsel %vm409, %v362, %v473
    %v538 = vsel %vm410, %v218, %v474
    %v539 = vsel %vm411, %v267, %v475
    %v540 = vsel %vm412, %v316, %v476
    %v541 = vsel %vm413, %v365, %v477
    %v542 = vsel %vm414, %v220, %v478
    %v543 = vsel %vm415, %v269, %v479
    %v544 = vsel %vm416, %v318, %v480
    %v545 = vsel %vm417, %v367, %v481
    %v546 = vsel %vm418, %v223, %v482
    %v547 = vsel %vm419, %v272, %v483
    %v548 = vsel %vm420, %v321, %v484
    %v549 = vsel %vm421, %v370, %v485
    %v550 = vsel %vm422, %v225, %v486
    %v551 = vsel %vm423, %v274, %v487
    %v552 = vsel %vm424, %v323, %v488
    %v553 = vsel %vm425, %v372, %v489
    %v554 = vsel %vm426, %v228, %v490
    %v555 = vsel %vm427, %v277, %v491
    %v556 = vsel %vm428, %v326, %v492
    %v557 = vsel %vm429, %v375, %v493
    %v558 = vsel %vm430, %v230, %v494
    %v559 = vsel %vm431, %v279, %v495
    %v560 = vsel %vm432, %v328, %v496
    %v561 = vsel %vm433, %v377, %v497
    %v562 = vsel %vm434, %v233, %v498
    %v563 = vsel %vm435, %v282, %v499
    %v564 = vsel %vm436, %v331, %v500
    %v565 = vsel %vm437, %v380, %v501
    %v566 = vsel %vm438, %v235, %v502
    %v567 = vsel %vm439, %v284, %v503
    %v568 = vsel %vm440, %v333, %v504
    %v569 = vsel %vm441, %v382, %v505
    %v570 = vsel %vm442, %v238, %v506
    %v571 = vsel %vm443, %v287, %v507
    %v572 = vsel %vm444, %v336, %v508
    %v573 = vsel %vm445, %v385, %v509
    %v574 = vsel %vm446, %v240, %v510
    %v575 = vsel %vm447, %v289, %v511
    %v576 = vsel %vm448, %v338, %v512
    %v577 = vsel %vm449, %v387, %v513
    %v578 = vsel %vm450, %v243, %v514
    %v579 = vsel %vm451, %v292, %v515
    %v580 = vsel %vm452, %v341, %v516
    %v581 = vsel %vm453, %v390, %v517
    %v582 = vsel %vm454, %v245, %v518
    %v583 = vsel %vm455, %v294, %v519
    %v584 = vsel %vm456, %v343, %v520
    %v585 = vsel %vm457, %v392, %v521
    %v586 = vpack.c.bf16 %v526, %v522
    %v587 = vpack.c.bf16 %v527, %v523
    %v588 = vpack.c.bf16 %v528, %v524
    %v589 = vpack.c.bf16 %v529, %v525
    %v590 = vpack.c.bf16 %v534, %v530
    %v591 = vpack.c.bf16 %v535, %v531
    %v592 = vpack.c.bf16 %v536, %v532
    %v593 = vpack.c.bf16 %v537, %v533
    %v594 = vpack.c.bf16 %v542, %v538
    %v595 = vpack.c.bf16 %v543, %v539
    %v596 = vpack.c.bf16 %v544, %v540
    %v597 = vpack.c.bf16 %v545, %v541
    %v598 = vpack.c.bf16 %v550, %v546
    %v599 = vpack.c.bf16 %v551, %v547
    %v600 = vpack.c.bf16 %v552, %v548
    %v601 = vpack.c.bf16 %v553, %v549
    %v602 = vpack.c.bf16 %v558, %v554
    %v603 = vpack.c.bf16 %v559, %v555
    %v604 = vpack.c.bf16 %v560, %v556
    %v605 = vpack.c.bf16 %v561, %v557
    %v606 = vpack.c.bf16 %v566, %v562
    %v607 = vpack.c.bf16 %v567, %v563
    %v608 = vpack.c.bf16 %v568, %v564
    %v609 = vpack.c.bf16 %v569, %v565
    %v610 = vpack.c.bf16 %v574, %v570
    %v611 = vpack.c.bf16 %v575, %v571
    %v612 = vpack.c.bf16 %v576, %v572
    %v613 = vpack.c.bf16 %v577, %v573
    %v614 = vpack.c.bf16 %v582, %v578
    %v615 = vpack.c.bf16 %v583, %v579
    %v616 = vpack.c.bf16 %v584, %v580
    %v617 = vpack.c.bf16 %v585, %v581
    %v618 = vld [vmem:[#allocation2] sm:$0xff]
    %v619 = vld [vmem:[#allocation2 + $0x8] sm:$0xff]
    %v620 = vld [vmem:[#allocation2 + $0x10] sm:$0xff]
    %v621 = vld [vmem:[#allocation2 + $0x18] sm:$0xff]
    %v622 = vld [vmem:[#allocation2 + $0x20] sm:$0xff]
    %v623 = vld [vmem:[#allocation2 + $0x28] sm:$0xff]
    %v624 = vld [vmem:[#allocation2 + $0x30] sm:$0xff]
    %v625 = vld [vmem:[#allocation2 + $0x38] sm:$0xff]
    %v626 = vld [vmem:[#allocation2 + $0x40] sm:$0xff]
    %v627 = vld [vmem:[#allocation2 + $0x48] sm:$0xff]
    %v628 = vld [vmem:[#allocation2 + $0x50] sm:$0xff]
    %v629 = vld [vmem:[#allocation2 + $0x58] sm:$0xff]
    %v630 = vld [vmem:[#allocation2 + $0x60] sm:$0xff]
    %v631 = vld [vmem:[#allocation2 + $0x68] sm:$0xff]
    %v632 = vld [vmem:[#allocation2 + $0x70] sm:$0xff]
    %v633 = vld [vmem:[#allocation2 + $0x78] sm:$0xff]
    %v634 = vld [vmem:[#allocation2 + $0x80] sm:$0xff]
    %v635 = vld [vmem:[#allocation2 + $0x88] sm:$0xff]
    %v636 = vld [vmem:[#allocation2 + $0x90] sm:$0xff]
    %v637 = vld [vmem:[#allocation2 + $0x98] sm:$0xff]
    %v638 = vld [vmem:[#allocation2 + $0xa0] sm:$0xff]
    %v639 = vld [vmem:[#allocation2 + $0xa8] sm:$0xff]
    %v640 = vld [vmem:[#allocation2 + $0xb0] sm:$0xff]
    %v641 = vld [vmem:[#allocation2 + $0xb8] sm:$0xff]
    %v642 = vld [vmem:[#allocation2 + $0xc0] sm:$0xff]
    %v643 = vld [vmem:[#allocation2 + $0xc8] sm:$0xff]
    %v644 = vld [vmem:[#allocation2 + $0xd0] sm:$0xff]
    %v645 = vld [vmem:[#allocation2 + $0xd8] sm:$0xff]
    %v646 = vld [vmem:[#allocation2 + $0xe0] sm:$0xff]
    %v647 = vld [vmem:[#allocation2 + $0xe8] sm:$0xff]
    %v648 = vld [vmem:[#allocation2 + $0xf0] sm:$0xff]
    %v649 = vld [vmem:[#allocation2 + $0xf8] sm:$0xff]
    %v650 = vld [vmem:[#allocation2 + $0x100] sm:$0xff]
    %v651 = vld [vmem:[#allocation2 + $0x108] sm:$0xff]
    %v652 = vld [vmem:[#allocation2 + $0x110] sm:$0xff]
    %v653 = vld [vmem:[#allocation2 + $0x118] sm:$0xff]
    %v654 = vld [vmem:[#allocation2 + $0x120] sm:$0xff]
    %v655 = vld [vmem:[#allocation2 + $0x128] sm:$0xff]
    %v656 = vld [vmem:[#allocation2 + $0x130] sm:$0xff]
    %v657 = vld [vmem:[#allocation2 + $0x138] sm:$0xff]
    %v658 = vld [vmem:[#allocation2 + $0x140] sm:$0xff]
    %v659 = vld [vmem:[#allocation2 + $0x148] sm:$0xff]
    %v660 = vld [vmem:[#allocation2 + $0x150] sm:$0xff]
    %v661 = vld [vmem:[#allocation2 + $0x158] sm:$0xff]
    %v662 = vld [vmem:[#allocation2 + $0x160] sm:$0xff]
    %v663 = vld [vmem:[#allocation2 + $0x168] sm:$0xff]
    %v664 = vld [vmem:[#allocation2 + $0x170] sm:$0xff]
    %v665 = vld [vmem:[#allocation2 + $0x178] sm:$0xff]
    %v666 = vld [vmem:[#allocation2 + $0x180] sm:$0xff]
    %v667 = vld [vmem:[#allocation2 + $0x188] sm:$0xff]
    %v668 = vld [vmem:[#allocation2 + $0x190] sm:$0xff]
    %v669 = vld [vmem:[#allocation2 + $0x198] sm:$0xff]
    %v670 = vld [vmem:[#allocation2 + $0x1a0] sm:$0xff]
    %v671 = vld [vmem:[#allocation2 + $0x1a8] sm:$0xff]
    %v672 = vld [vmem:[#allocation2 + $0x1b0] sm:$0xff]
    %v673 = vld [vmem:[#allocation2 + $0x1b8] sm:$0xff]
    %v674 = vld [vmem:[#allocation2 + $0x1c0] sm:$0xff]
    %v675 = vld [vmem:[#allocation2 + $0x1c8] sm:$0xff]
    %v676 = vld [vmem:[#allocation2 + $0x1d0] sm:$0xff]
    %v677 = vld [vmem:[#allocation2 + $0x1d8] sm:$0xff]
    %v678 = vld [vmem:[#allocation2 + $0x1e0] sm:$0xff]
    %v679 = vld [vmem:[#allocation2 + $0x1e8] sm:$0xff]
    %v680 = vld [vmem:[#allocation2 + $0x1f0] sm:$0xff]
    %v681 = vld [vmem:[#allocation2 + $0x1f8] sm:$0xff]
    %v682 = vld [vmem:[%s4] sm:$0x3]
    %v684 = vperm.slane %v682, 0
    %v685 = vperm.slane %v682, 1
    %v752 = vunpack.c.l.b16 %v618
    %v753 = vunpack.c.h.b16 %v618
    %v754 = vunpack.c.l.b16 %v619
    %v755 = vunpack.c.h.b16 %v619
    %v756 = vunpack.c.l.b16 %v620
    %v757 = vunpack.c.h.b16 %v620
    %v758 = vunpack.c.l.b16 %v621
    %v759 = vunpack.c.h.b16 %v621
    %v760 = vunpack.c.l.b16 %v622
    %v761 = vunpack.c.h.b16 %v622
    %v762 = vunpack.c.l.b16 %v623
    %v763 = vunpack.c.h.b16 %v623
    %v764 = vunpack.c.l.b16 %v624
    %v765 = vunpack.c.h.b16 %v624
    %v766 = vunpack.c.l.b16 %v625
    %v767 = vunpack.c.h.b16 %v625
    %v768 = vunpack.c.l.b16 %v626
    %v769 = vunpack.c.h.b16 %v626
    %v770 = vunpack.c.l.b16 %v627
    %v771 = vunpack.c.h.b16 %v627
    %v772 = vunpack.c.l.b16 %v628
    %v773 = vunpack.c.h.b16 %v628
    %v774 = vunpack.c.l.b16 %v629
    %v775 = vunpack.c.h.b16 %v629
    %v776 = vunpack.c.l.b16 %v630
    %v777 = vunpack.c.h.b16 %v630
    %v778 = vunpack.c.l.b16 %v631
    %v779 = vunpack.c.h.b16 %v631
    %v780 = vunpack.c.l.b16 %v632
    %v781 = vunpack.c.h.b16 %v632
    %v782 = vunpack.c.l.b16 %v633
    %v783 = vunpack.c.h.b16 %v633
    %v784 = vunpack.c.l.b16 %v634
    %v785 = vunpack.c.h.b16 %v634
    %v786 = vunpack.c.l.b16 %v635
    %v787 = vunpack.c.h.b16 %v635
    %v788 = vunpack.c.l.b16 %v636
    %v789 = vunpack.c.h.b16 %v636
    %v790 = vunpack.c.l.b16 %v637
    %v791 = vunpack.c.h.b16 %v637
    %v792 = vunpack.c.l.b16 %v638
    %v793 = vunpack.c.h.b16 %v638
    %v794 = vunpack.c.l.b16 %v639
    %v795 = vunpack.c.h.b16 %v639
    %v796 = vunpack.c.l.b16 %v640
    %v797 = vunpack.c.h.b16 %v640
    %v798 = vunpack.c.l.b16 %v641
    %v799 = vunpack.c.h.b16 %v641
    %v800 = vunpack.c.l.b16 %v642
    %v801 = vunpack.c.h.b16 %v642
    %v802 = vunpack.c.l.b16 %v643
    %v803 = vunpack.c.h.b16 %v643
    %v804 = vunpack.c.l.b16 %v644
    %v805 = vunpack.c.h.b16 %v644
    %v806 = vunpack.c.l.b16 %v645
    %v807 = vunpack.c.h.b16 %v645
    %v808 = vunpack.c.l.b16 %v646
    %v809 = vunpack.c.h.b16 %v646
    %v810 = vunpack.c.l.b16 %v647
    %v811 = vunpack.c.h.b16 %v647
    %v812 = vunpack.c.l.b16 %v648
    %v813 = vunpack.c.h.b16 %v648
    %v814 = vunpack.c.l.b16 %v649
    %v815 = vunpack.c.h.b16 %v649
    %v816 = vunpack.c.l.b16 %v650
    %v817 = vunpack.c.h.b16 %v650
    %v818 = vunpack.c.l.b16 %v651
    %v819 = vunpack.c.h.b16 %v651
    %v820 = vunpack.c.l.b16 %v652
    %v821 = vunpack.c.h.b16 %v652
    %v822 = vunpack.c.l.b16 %v653
    %v823 = vunpack.c.h.b16 %v653
    %v824 = vunpack.c.l.b16 %v654
    %v825 = vunpack.c.h.b16 %v654
    %v826 = vunpack.c.l.b16 %v655
    %v827 = vunpack.c.h.b16 %v655
    %v828 = vunpack.c.l.b16 %v656
    %v829 = vunpack.c.h.b16 %v656
    %v830 = vunpack.c.l.b16 %v657
    %v831 = vunpack.c.h.b16 %v657
    %v832 = vunpack.c.l.b16 %v658
    %v833 = vunpack.c.h.b16 %v658
    %v834 = vunpack.c.l.b16 %v659
    %v835 = vunpack.c.h.b16 %v659
    %v836 = vunpack.c.l.b16 %v660
    %v837 = vunpack.c.h.b16 %v660
    %v838 = vunpack.c.l.b16 %v661
    %v839 = vunpack.c.h.b16 %v661
    %v840 = vunpack.c.l.b16 %v662
    %v841 = vunpack.c.h.b16 %v662
    %v842 = vunpack.c.l.b16 %v663
    %v843 = vunpack.c.h.b16 %v663
    %v844 = vunpack.c.l.b16 %v664
    %v845 = vunpack.c.h.b16 %v664
    %v846 = vunpack.c.l.b16 %v665
    %v847 = vunpack.c.h.b16 %v665
    %v848 = vunpack.c.l.b16 %v666
    %v849 = vunpack.c.h.b16 %v666
    %v850 = vunpack.c.l.b16 %v667
    %v851 = vunpack.c.h.b16 %v667
    %v852 = vunpack.c.l.b16 %v668
    %v853 = vunpack.c.h.b16 %v668
    %v854 = vunpack.c.l.b16 %v669
    %v855 = vunpack.c.h.b16 %v669
    %v856 = vunpack.c.l.b16 %v670
    %v857 = vunpack.c.h.b16 %v670
    %v858 = vunpack.c.l.b16 %v671
    %v859 = vunpack.c.h.b16 %v671
    %v860 = vunpack.c.l.b16 %v672
    %v861 = vunpack.c.h.b16 %v672
    %v862 = vunpack.c.l.b16 %v673
    %v863 = vunpack.c.h.b16 %v673
    %v864 = vunpack.c.l.b16 %v674
    %v865 = vunpack.c.h.b16 %v674
    %v866 = vunpack.c.l.b16 %v675
    %v867 = vunpack.c.h.b16 %v675
    %v868 = vunpack.c.l.b16 %v676
    %v869 = vunpack.c.h.b16 %v676
    %v870 = vunpack.c.l.b16 %v677
    %v871 = vunpack.c.h.b16 %v677
    %v872 = vunpack.c.l.b16 %v678
    %v873 = vunpack.c.h.b16 %v678
    %v874 = vunpack.c.l.b16 %v679
    %v875 = vunpack.c.h.b16 %v679
    %v876 = vunpack.c.l.b16 %v680
    %v877 = vunpack.c.h.b16 %v680
    %v878 = vunpack.c.l.b16 %v681
    %v879 = vunpack.c.h.b16 %v681
    %v880 = vpack.c.b16 %v754, %v752
    %v881 = vpack.c.b16 %v755, %v753
    %v882 = vpack.c.b16 %v758, %v756
    %v883 = vpack.c.b16 %v759, %v757
    %v884 = vpack.c.b16 %v762, %v760
    %v885 = vpack.c.b16 %v763, %v761
    %v886 = vpack.c.b16 %v766, %v764
    %v887 = vpack.c.b16 %v767, %v765
    %v888 = vpack.c.b16 %v770, %v768
    %v889 = vpack.c.b16 %v771, %v769
    %v890 = vpack.c.b16 %v774, %v772
    %v891 = vpack.c.b16 %v775, %v773
    %v892 = vpack.c.b16 %v778, %v776
    %v893 = vpack.c.b16 %v779, %v777
    %v894 = vpack.c.b16 %v782, %v780
    %v895 = vpack.c.b16 %v783, %v781
    %v896 = vpack.c.b16 %v786, %v784
    %v897 = vpack.c.b16 %v787, %v785
    %v898 = vpack.c.b16 %v790, %v788
    %v899 = vpack.c.b16 %v791, %v789
    %v900 = vpack.c.b16 %v794, %v792
    %v901 = vpack.c.b16 %v795, %v793
    %v902 = vpack.c.b16 %v798, %v796
    %v903 = vpack.c.b16 %v799, %v797
    %v904 = vpack.c.b16 %v802, %v800
    %v905 = vpack.c.b16 %v803, %v801
    %v906 = vpack.c.b16 %v806, %v804
    %v907 = vpack.c.b16 %v807, %v805
    %v908 = vpack.c.b16 %v810, %v808
    %v909 = vpack.c.b16 %v811, %v809
    %v910 = vpack.c.b16 %v814, %v812
    %v911 = vpack.c.b16 %v815, %v813
    %v912 = vpack.c.b16 %v818, %v816
    %v913 = vpack.c.b16 %v819, %v817
    %v914 = vpack.c.b16 %v822, %v820
    %v915 = vpack.c.b16 %v823, %v821
    %v916 = vpack.c.b16 %v826, %v824
    %v917 = vpack.c.b16 %v827, %v825
    %v918 = vpack.c.b16 %v830, %v828
    %v919 = vpack.c.b16 %v831, %v829
    %v920 = vpack.c.b16 %v834, %v832
    %v921 = vpack.c.b16 %v835, %v833
    %v922 = vpack.c.b16 %v838, %v836
    %v923 = vpack.c.b16 %v839, %v837
    %v924 = vpack.c.b16 %v842, %v840
    %v925 = vpack.c.b16 %v843, %v841
    %v926 = vpack.c.b16 %v846, %v844
    %v927 = vpack.c.b16 %v847, %v845
    %v928 = vpack.c.b16 %v850, %v848
    %v929 = vpack.c.b16 %v851, %v849
    %v930 = vpack.c.b16 %v854, %v852
    %v931 = vpack.c.b16 %v855, %v853
    %v932 = vpack.c.b16 %v858, %v856
    %v933 = vpack.c.b16 %v859, %v857
    %v934 = vpack.c.b16 %v862, %v860
    %v935 = vpack.c.b16 %v863, %v861
    %v936 = vpack.c.b16 %v866, %v864
    %v937 = vpack.c.b16 %v867, %v865
    %v938 = vpack.c.b16 %v870, %v868
    %v939 = vpack.c.b16 %v871, %v869
    %v940 = vpack.c.b16 %v874, %v872
    %v941 = vpack.c.b16 %v875, %v873
    %v942 = vpack.c.b16 %v878, %v876
    %v943 = vpack.c.b16 %v879, %v877
    %1008 = vmatpush.bf16.msra.mxu0 %v894
    %1009 = vmatpush.bf16.msra.mxu0 %v892
    %1010 = vmatpush.bf16.msra.mxu0 %v890
    %1011 = vmatpush.bf16.msra.mxu0 %v888
    %1012 = vmatpush.bf16.msra.mxu0 %v886
    %1013 = vmatpush.bf16.msra.mxu0 %v884
    %1014 = vmatpush.bf16.msra.mxu0 %v882
    %1015 = vmatpush.bf16.msra.mxu0 %v880
    %1016 = vmatmul.bf16.gmra.mxu0 %v586
    %v1017 = vpop.f32.mrf.mxu0
    %v1018 = vadd.f32 %v684, %v1017
    %v1019 = vpop.f32.mrf.mxu0
    %v1020 = vadd.f32 %v684, %v1019
    %1021 = vmatmul.bf16.gmra.mxu0 %v590
    %v1022 = vpop.f32.mrf.mxu0
    %v1023 = vadd.f32 %v684, %v1022
    %v1024 = vpop.f32.mrf.mxu0
    %v1025 = vadd.f32 %v684, %v1024
    %1026 = vmatmul.bf16.gmra.mxu0 %v594
    %v1027 = vpop.f32.mrf.mxu0
    %v1028 = vadd.f32 %v684, %v1027
    %v1029 = vpop.f32.mrf.mxu0
    %v1030 = vadd.f32 %v684, %v1029
    %1031 = vmatmul.bf16.gmra.mxu0 %v598
    %v1032 = vpop.f32.mrf.mxu0
    %v1033 = vadd.f32 %v684, %v1032
    %v1034 = vpop.f32.mrf.mxu0
    %v1035 = vadd.f32 %v684, %v1034
    %1036 = vmatmul.bf16.gmra.mxu0 %v602
    %v1037 = vpop.f32.mrf.mxu0
    %v1038 = vadd.f32 %v684, %v1037
    %v1039 = vpop.f32.mrf.mxu0
    %v1040 = vadd.f32 %v684, %v1039
    %1041 = vmatmul.bf16.gmra.mxu0 %v606
    %v1042 = vpop.f32.mrf.mxu0
    %v1043 = vadd.f32 %v684, %v1042
    %v1044 = vpop.f32.mrf.mxu0
    %v1045 = vadd.f32 %v684, %v1044
    %1046 = vmatmul.bf16.gmra.mxu0 %v610
    %v1047 = vpop.f32.mrf.mxu0
    %v1048 = vadd.f32 %v684, %v1047
    %v1049 = vpop.f32.mrf.mxu0
    %v1050 = vadd.f32 %v684, %v1049
    %1051 = vmatmul.bf16.gmra.mxu0 %v614
    %v1052 = vpop.f32.mrf.mxu0
    %v1053 = vadd.f32 %v684, %v1052
    %v1054 = vpop.f32.mrf.mxu0
    %v1055 = vadd.f32 %v684, %v1054
    %1056 = vdwg.mxu0
    %1057 = vmatpush.bf16.msra.mxu0 %v910
    %1058 = vmatpush.bf16.msra.mxu0 %v908
    %1059 = vmatpush.bf16.msra.mxu0 %v906
    %1060 = vmatpush.bf16.msra.mxu0 %v904
    %1061 = vmatpush.bf16.msra.mxu0 %v902
    %1062 = vmatpush.bf16.msra.mxu0 %v900
    %1063 = vmatpush.bf16.msra.mxu0 %v898
    %1064 = vmatpush.bf16.msra.mxu0 %v896
    %1065 = vmatmul.bf16.gmra.mxu0 %v587
    %v1066 = vpop.f32.mrf.mxu0
    %v1067 = vadd.f32 %v1018, %v1066
    %v1068 = vpop.f32.mrf.mxu0
    %v1069 = vadd.f32 %v1020, %v1068
    %1070 = vmatmul.bf16.gmra.mxu0 %v591
    %v1071 = vpop.f32.mrf.mxu0
    %v1072 = vadd.f32 %v1023, %v1071
    %v1073 = vpop.f32.mrf.mxu0
    %v1074 = vadd.f32 %v1025, %v1073
    %1075 = vmatmul.bf16.gmra.mxu0 %v595
    %v1076 = vpop.f32.mrf.mxu0
    %v1077 = vadd.f32 %v1028, %v1076
    %v1078 = vpop.f32.mrf.mxu0
    %v1079 = vadd.f32 %v1030, %v1078
    %1080 = vmatmul.bf16.gmra.mxu0 %v599
    %v1081 = vpop.f32.mrf.mxu0
    %v1082 = vadd.f32 %v1033, %v1081
    %v1083 = vpop.f32.mrf.mxu0
    %v1084 = vadd.f32 %v1035, %v1083
    %1085 = vmatmul.bf16.gmra.mxu0 %v603
    %v1086 = vpop.f32.mrf.mxu0
    %v1087 = vadd.f32 %v1038, %v1086
    %v1088 = vpop.f32.mrf.mxu0
    %v1089 = vadd.f32 %v1040, %v1088
    %1090 = vmatmul.bf16.gmra.mxu0 %v607
    %v1091 = vpop.f32.mrf.mxu0
    %v1092 = vadd.f32 %v1043, %v1091
    %v1093 = vpop.f32.mrf.mxu0
    %v1094 = vadd.f32 %v1045, %v1093
    %1095 = vmatmul.bf16.gmra.mxu0 %v611
    %v1096 = vpop.f32.mrf.mxu0
    %v1097 = vadd.f32 %v1048, %v1096
    %v1098 = vpop.f32.mrf.mxu0
    %v1099 = vadd.f32 %v1050, %v1098
    %1100 = vmatmul.bf16.gmra.mxu0 %v615
    %v1101 = vpop.f32.mrf.mxu0
    %v1102 = vadd.f32 %v1053, %v1101
    %v1103 = vpop.f32.mrf.mxu0
    %v1104 = vadd.f32 %v1055, %v1103
    %1105 = vdwg.mxu0
    %1106 = vmatpush.bf16.msra.mxu0 %v926
    %1107 = vmatpush.bf16.msra.mxu0 %v924
    %1108 = vmatpush.bf16.msra.mxu0 %v922
    %1109 = vmatpush.bf16.msra.mxu0 %v920
    %1110 = vmatpush.bf16.msra.mxu0 %v918
    %1111 = vmatpush.bf16.msra.mxu0 %v916
    %1112 = vmatpush.bf16.msra.mxu0 %v914
    %1113 = vmatpush.bf16.msra.mxu0 %v912
    %1114 = vmatmul.bf16.gmra.mxu0 %v588
    %v1115 = vpop.f32.mrf.mxu0
    %v1116 = vadd.f32 %v1067, %v1115
    %v1117 = vpop.f32.mrf.mxu0
    %v1118 = vadd.f32 %v1069, %v1117
    %1119 = vmatmul.bf16.gmra.mxu0 %v592
    %v1120 = vpop.f32.mrf.mxu0
    %v1121 = vadd.f32 %v1072, %v1120
    %v1122 = vpop.f32.mrf.mxu0
    %v1123 = vadd.f32 %v1074, %v1122
    %1124 = vmatmul.bf16.gmra.mxu0 %v596
    %v1125 = vpop.f32.mrf.mxu0
    %v1126 = vadd.f32 %v1077, %v1125
    %v1127 = vpop.f32.mrf.mxu0
    %v1128 = vadd.f32 %v1079, %v1127
    %1129 = vmatmul.bf16.gmra.mxu0 %v600
    %v1130 = vpop.f32.mrf.mxu0
    %v1131 = vadd.f32 %v1082, %v1130
    %v1132 = vpop.f32.mrf.mxu0
    %v1133 = vadd.f32 %v1084, %v1132
    %1134 = vmatmul.bf16.gmra.mxu0 %v604
    %v1135 = vpop.f32.mrf.mxu0
    %v1136 = vadd.f32 %v1087, %v1135
    %v1137 = vpop.f32.mrf.mxu0
    %v1138 = vadd.f32 %v1089, %v1137
    %1139 = vmatmul.bf16.gmra.mxu0 %v608
    %v1140 = vpop.f32.mrf.mxu0
    %v1141 = vadd.f32 %v1092, %v1140
    %v1142 = vpop.f32.mrf.mxu0
    %v1143 = vadd.f32 %v1094, %v1142
    %1144 = vmatmul.bf16.gmra.mxu0 %v612
    %v1145 = vpop.f32.mrf.mxu0
    %v1146 = vadd.f32 %v1097, %v1145
    %v1147 = vpop.f32.mrf.mxu0
    %v1148 = vadd.f32 %v1099, %v1147
    %1149 = vmatmul.bf16.gmra.mxu0 %v616
    %v1150 = vpop.f32.mrf.mxu0
    %v1151 = vadd.f32 %v1102, %v1150
    %v1152 = vpop.f32.mrf.mxu0
    %v1153 = vadd.f32 %v1104, %v1152
    %1154 = vdwg.mxu0
    %1155 = vmatpush.bf16.msra.mxu0 %v942
    %1156 = vmatpush.bf16.msra.mxu0 %v940
    %1157 = vmatpush.bf16.msra.mxu0 %v938
    %1158 = vmatpush.bf16.msra.mxu0 %v936
    %1159 = vmatpush.bf16.msra.mxu0 %v934
    %1160 = vmatpush.bf16.msra.mxu0 %v932
    %1161 = vmatpush.bf16.msra.mxu0 %v930
    %1162 = vmatpush.bf16.msra.mxu0 %v928
    %1163 = vmatmul.bf16.gmra.mxu0 %v589
    %v1164 = vpop.f32.mrf.mxu0
    %v1165 = vadd.f32 %v1116, %v1164
    %v1166 = vpop.f32.mrf.mxu0
    %v1167 = vadd.f32 %v1118, %v1166
    %1168 = vmatmul.bf16.gmra.mxu0 %v593
    %v1169 = vpop.f32.mrf.mxu0
    %v1170 = vadd.f32 %v1121, %v1169
    %v1171 = vpop.f32.mrf.mxu0
    %v1172 = vadd.f32 %v1123, %v1171
    %1173 = vmatmul.bf16.gmra.mxu0 %v597
    %v1174 = vpop.f32.mrf.mxu0
    %v1175 = vadd.f32 %v1126, %v1174
    %v1176 = vpop.f32.mrf.mxu0
    %v1177 = vadd.f32 %v1128, %v1176
    %1178 = vmatmul.bf16.gmra.mxu0 %v601
    %v1179 = vpop.f32.mrf.mxu0
    %v1180 = vadd.f32 %v1131, %v1179
    %v1181 = vpop.f32.mrf.mxu0
    %v1182 = vadd.f32 %v1133, %v1181
    %1183 = vmatmul.bf16.gmra.mxu0 %v605
    %v1184 = vpop.f32.mrf.mxu0
    %v1185 = vadd.f32 %v1136, %v1184
    %v1186 = vpop.f32.mrf.mxu0
    %v1187 = vadd.f32 %v1138, %v1186
    %1188 = vmatmul.bf16.gmra.mxu0 %v609
    %v1189 = vpop.f32.mrf.mxu0
    %v1190 = vadd.f32 %v1141, %v1189
    %v1191 = vpop.f32.mrf.mxu0
    %v1192 = vadd.f32 %v1143, %v1191
    %1193 = vmatmul.bf16.gmra.mxu0 %v613
    %v1194 = vpop.f32.mrf.mxu0
    %v1195 = vadd.f32 %v1146, %v1194
    %v1196 = vpop.f32.mrf.mxu0
    %v1197 = vadd.f32 %v1148, %v1196
    %1198 = vmatmul.bf16.gmra.mxu0 %v617
    %v1199 = vpop.f32.mrf.mxu0
    %v1200 = vadd.f32 %v1151, %v1199
    %v1201 = vpop.f32.mrf.mxu0
    %v1202 = vadd.f32 %v1153, %v1201
    %1203 = vdwg.mxu0
    %1204 = vmatpush.bf16.msra.mxu0 %v895
    %1205 = vmatpush.bf16.msra.mxu0 %v893
    %1206 = vmatpush.bf16.msra.mxu0 %v891
    %1207 = vmatpush.bf16.msra.mxu0 %v889
    %1208 = vmatpush.bf16.msra.mxu0 %v887
    %1209 = vmatpush.bf16.msra.mxu0 %v885
    %1210 = vmatpush.bf16.msra.mxu0 %v883
    %1211 = vmatpush.bf16.msra.mxu0 %v881
    %1212 = vmatmul.bf16.gmra.mxu0 %v586
    %v1213 = vpop.f32.mrf.mxu0
    %v1214 = vadd.f32 %v685, %v1213
    %v1215 = vpop.f32.mrf.mxu0
    %v1216 = vadd.f32 %v685, %v1215
    %1217 = vmatmul.bf16.gmra.mxu0 %v590
    %v1218 = vpop.f32.mrf.mxu0
    %v1219 = vadd.f32 %v685, %v1218
    %v1220 = vpop.f32.mrf.mxu0
    %v1221 = vadd.f32 %v685, %v1220
    %1222 = vmatmul.bf16.gmra.mxu0 %v594
    %v1223 = vpop.f32.mrf.mxu0
    %v1224 = vadd.f32 %v685, %v1223
    %v1225 = vpop.f32.mrf.mxu0
    %v1226 = vadd.f32 %v685, %v1225
    %1227 = vmatmul.bf16.gmra.mxu0 %v598
    %v1228 = vpop.f32.mrf.mxu0
    %v1229 = vadd.f32 %v685, %v1228
    %v1230 = vpop.f32.mrf.mxu0
    %v1231 = vadd.f32 %v685, %v1230
    %1232 = vmatmul.bf16.gmra.mxu0 %v602
    %v1233 = vpop.f32.mrf.mxu0
    %v1234 = vadd.f32 %v685, %v1233
    %v1235 = vpop.f32.mrf.mxu0
    %v1236 = vadd.f32 %v685, %v1235
    %1237 = vmatmul.bf16.gmra.mxu0 %v606
    %v1238 = vpop.f32.mrf.mxu0
    %v1239 = vadd.f32 %v685, %v1238
    %v1240 = vpop.f32.mrf.mxu0
    %v1241 = vadd.f32 %v685, %v1240
    %1242 = vmatmul.bf16.gmra.mxu0 %v610
    %v1243 = vpop.f32.mrf.mxu0
    %v1244 = vadd.f32 %v685, %v1243
    %v1245 = vpop.f32.mrf.mxu0
    %v1246 = vadd.f32 %v685, %v1245
    %1247 = vmatmul.bf16.gmra.mxu0 %v614
    %v1248 = vpop.f32.mrf.mxu0
    %v1249 = vadd.f32 %v685, %v1248
    %v1250 = vpop.f32.mrf.mxu0
    %v1251 = vadd.f32 %v685, %v1250
    %1252 = vdwg.mxu0
    %1253 = vmatpush.bf16.msra.mxu0 %v911
    %1254 = vmatpush.bf16.msra.mxu0 %v909
    %1255 = vmatpush.bf16.msra.mxu0 %v907
    %1256 = vmatpush.bf16.msra.mxu0 %v905
    %1257 = vmatpush.bf16.msra.mxu0 %v903
    %1258 = vmatpush.bf16.msra.mxu0 %v901
    %1259 = vmatpush.bf16.msra.mxu0 %v899
    %1260 = vmatpush.bf16.msra.mxu0 %v897
    %1261 = vmatmul.bf16.gmra.mxu0 %v587
    %v1262 = vpop.f32.mrf.mxu0
    %v1263 = vadd.f32 %v1214, %v1262
    %v1264 = vpop.f32.mrf.mxu0
    %v1265 = vadd.f32 %v1216, %v1264
    %1266 = vmatmul.bf16.gmra.mxu0 %v591
    %v1267 = vpop.f32.mrf.mxu0
    %v1268 = vadd.f32 %v1219, %v1267
    %v1269 = vpop.f32.mrf.mxu0
    %v1270 = vadd.f32 %v1221, %v1269
    %1271 = vmatmul.bf16.gmra.mxu0 %v595
    %v1272 = vpop.f32.mrf.mxu0
    %v1273 = vadd.f32 %v1224, %v1272
    %v1274 = vpop.f32.mrf.mxu0
    %v1275 = vadd.f32 %v1226, %v1274
    %1276 = vmatmul.bf16.gmra.mxu0 %v599
    %v1277 = vpop.f32.mrf.mxu0
    %v1278 = vadd.f32 %v1229, %v1277
    %v1279 = vpop.f32.mrf.mxu0
    %v1280 = vadd.f32 %v1231, %v1279
    %1281 = vmatmul.bf16.gmra.mxu0 %v603
    %v1282 = vpop.f32.mrf.mxu0
    %v1283 = vadd.f32 %v1234, %v1282
    %v1284 = vpop.f32.mrf.mxu0
    %v1285 = vadd.f32 %v1236, %v1284
    %1286 = vmatmul.bf16.gmra.mxu0 %v607
    %v1287 = vpop.f32.mrf.mxu0
    %v1288 = vadd.f32 %v1239, %v1287
    %v1289 = vpop.f32.mrf.mxu0
    %v1290 = vadd.f32 %v1241, %v1289
    %1291 = vmatmul.bf16.gmra.mxu0 %v611
    %v1292 = vpop.f32.mrf.mxu0
    %v1293 = vadd.f32 %v1244, %v1292
    %v1294 = vpop.f32.mrf.mxu0
    %v1295 = vadd.f32 %v1246, %v1294
    %1296 = vmatmul.bf16.gmra.mxu0 %v615
    %v1297 = vpop.f32.mrf.mxu0
    %v1298 = vadd.f32 %v1249, %v1297
    %v1299 = vpop.f32.mrf.mxu0
    %v1300 = vadd.f32 %v1251, %v1299
    %1301 = vdwg.mxu0
    %1302 = vmatpush.bf16.msra.mxu0 %v927
    %1303 = vmatpush.bf16.msra.mxu0 %v925
    %1304 = vmatpush.bf16.msra.mxu0 %v923
    %1305 = vmatpush.bf16.msra.mxu0 %v921
    %1306 = vmatpush.bf16.msra.mxu0 %v919
    %1307 = vmatpush.bf16.msra.mxu0 %v917
    %1308 = vmatpush.bf16.msra.mxu0 %v915
    %1309 = vmatpush.bf16.msra.mxu0 %v913
    %1310 = vmatmul.bf16.gmra.mxu0 %v588
    %v1311 = vpop.f32.mrf.mxu0
    %v1312 = vadd.f32 %v1263, %v1311
    %v1313 = vpop.f32.mrf.mxu0
    %v1314 = vadd.f32 %v1265, %v1313
    %1315 = vmatmul.bf16.gmra.mxu0 %v592
    %v1316 = vpop.f32.mrf.mxu0
    %v1317 = vadd.f32 %v1268, %v1316
    %v1318 = vpop.f32.mrf.mxu0
    %v1319 = vadd.f32 %v1270, %v1318
    %1320 = vmatmul.bf16.gmra.mxu0 %v596
    %v1321 = vpop.f32.mrf.mxu0
    %v1322 = vadd.f32 %v1273, %v1321
    %v1323 = vpop.f32.mrf.mxu0
    %v1324 = vadd.f32 %v1275, %v1323
    %1325 = vmatmul.bf16.gmra.mxu0 %v600
    %v1326 = vpop.f32.mrf.mxu0
    %v1327 = vadd.f32 %v1278, %v1326
    %v1328 = vpop.f32.mrf.mxu0
    %v1329 = vadd.f32 %v1280, %v1328
    %1330 = vmatmul.bf16.gmra.mxu0 %v604
    %v1331 = vpop.f32.mrf.mxu0
    %v1332 = vadd.f32 %v1283, %v1331
    %v1333 = vpop.f32.mrf.mxu0
    %v1334 = vadd.f32 %v1285, %v1333
    %1335 = vmatmul.bf16.gmra.mxu0 %v608
    %v1336 = vpop.f32.mrf.mxu0
    %v1337 = vadd.f32 %v1288, %v1336
    %v1338 = vpop.f32.mrf.mxu0
    %v1339 = vadd.f32 %v1290, %v1338
    %1340 = vmatmul.bf16.gmra.mxu0 %v612
    %v1341 = vpop.f32.mrf.mxu0
    %v1342 = vadd.f32 %v1293, %v1341
    %v1343 = vpop.f32.mrf.mxu0
    %v1344 = vadd.f32 %v1295, %v1343
    %1345 = vmatmul.bf16.gmra.mxu0 %v616
    %v1346 = vpop.f32.mrf.mxu0
    %v1347 = vadd.f32 %v1298, %v1346
    %v1348 = vpop.f32.mrf.mxu0
    %v1349 = vadd.f32 %v1300, %v1348
    %1350 = vdwg.mxu0
    %1351 = vmatpush.bf16.msra.mxu0 %v943
    %1352 = vmatpush.bf16.msra.mxu0 %v941
    %1353 = vmatpush.bf16.msra.mxu0 %v939
    %1354 = vmatpush.bf16.msra.mxu0 %v937
    %1355 = vmatpush.bf16.msra.mxu0 %v935
    %1356 = vmatpush.bf16.msra.mxu0 %v933
    %1357 = vmatpush.bf16.msra.mxu0 %v931
    %1358 = vmatpush.bf16.msra.mxu0 %v929
    %1359 = vmatmul.bf16.gmra.mxu0 %v589
    %v1360 = vpop.f32.mrf.mxu0
    %v1361 = vadd.f32 %v1312, %v1360
    %v1362 = vpop.f32.mrf.mxu0
    %v1363 = vadd.f32 %v1314, %v1362
    %1364 = vmatmul.bf16.gmra.mxu0 %v593
    %v1365 = vpop.f32.mrf.mxu0
    %v1366 = vadd.f32 %v1317, %v1365
    %v1367 = vpop.f32.mrf.mxu0
    %v1368 = vadd.f32 %v1319, %v1367
    %1369 = vmatmul.bf16.gmra.mxu0 %v597
    %v1370 = vpop.f32.mrf.mxu0
    %v1371 = vadd.f32 %v1322, %v1370
    %v1372 = vpop.f32.mrf.mxu0
    %v1373 = vadd.f32 %v1324, %v1372
    %1374 = vmatmul.bf16.gmra.mxu0 %v601
    %v1375 = vpop.f32.mrf.mxu0
    %v1376 = vadd.f32 %v1327, %v1375
    %v1377 = vpop.f32.mrf.mxu0
    %v1378 = vadd.f32 %v1329, %v1377
    %1379 = vmatmul.bf16.gmra.mxu0 %v605
    %v1380 = vpop.f32.mrf.mxu0
    %v1381 = vadd.f32 %v1332, %v1380
    %v1382 = vpop.f32.mrf.mxu0
    %v1383 = vadd.f32 %v1334, %v1382
    %1384 = vmatmul.bf16.gmra.mxu0 %v609
    %v1385 = vpop.f32.mrf.mxu0
    %v1386 = vadd.f32 %v1337, %v1385
    %v1387 = vpop.f32.mrf.mxu0
    %v1388 = vadd.f32 %v1339, %v1387
    %1389 = vmatmul.bf16.gmra.mxu0 %v613
    %v1390 = vpop.f32.mrf.mxu0
    %v1391 = vadd.f32 %v1342, %v1390
    %v1392 = vpop.f32.mrf.mxu0
    %v1393 = vadd.f32 %v1344, %v1392
    %1394 = vmatmul.bf16.gmra.mxu0 %v617
    %v1395 = vpop.f32.mrf.mxu0
    %v1396 = vadd.f32 %v1347, %v1395
    %v1397 = vpop.f32.mrf.mxu0
    %v1398 = vadd.f32 %v1349, %v1397
    %1399 = vdwg.mxu0
    %vm1400 = vcmp.gt.f32.partialorder %v1165, 0.0
    %vm1401 = vcmp.gt.f32.partialorder %v1361, 0.0
    %vm1402 = vcmp.gt.f32.partialorder %v1167, 0.0
    %vm1403 = vcmp.gt.f32.partialorder %v1363, 0.0
    %vm1404 = vcmp.gt.f32.partialorder %v1170, 0.0
    %vm1405 = vcmp.gt.f32.partialorder %v1366, 0.0
    %vm1406 = vcmp.gt.f32.partialorder %v1172, 0.0
    %vm1407 = vcmp.gt.f32.partialorder %v1368, 0.0
    %vm1408 = vcmp.gt.f32.partialorder %v1175, 0.0
    %vm1409 = vcmp.gt.f32.partialorder %v1371, 0.0
    %vm1410 = vcmp.gt.f32.partialorder %v1177, 0.0
    %vm1411 = vcmp.gt.f32.partialorder %v1373, 0.0
    %vm1412 = vcmp.gt.f32.partialorder %v1180, 0.0
    %vm1413 = vcmp.gt.f32.partialorder %v1376, 0.0
    %vm1414 = vcmp.gt.f32.partialorder %v1182, 0.0
    %vm1415 = vcmp.gt.f32.partialorder %v1378, 0.0
    %vm1416 = vcmp.gt.f32.partialorder %v1185, 0.0
    %vm1417 = vcmp.gt.f32.partialorder %v1381, 0.0
    %vm1418 = vcmp.gt.f32.partialorder %v1187, 0.0
    %vm1419 = vcmp.gt.f32.partialorder %v1383, 0.0
    %vm1420 = vcmp.gt.f32.partialorder %v1190, 0.0
    %vm1421 = vcmp.gt.f32.partialorder %v1386, 0.0
    %vm1422 = vcmp.gt.f32.partialorder %v1192, 0.0
    %vm1423 = vcmp.gt.f32.partialorder %v1388, 0.0
    %vm1424 = vcmp.gt.f32.partialorder %v1195, 0.0
    %vm1425 = vcmp.gt.f32.partialorder %v1391, 0.0
    %vm1426 = vcmp.gt.f32.partialorder %v1197, 0.0
    %vm1427 = vcmp.gt.f32.partialorder %v1393, 0.0
    %vm1428 = vcmp.gt.f32.partialorder %v1200, 0.0
    %vm1429 = vcmp.gt.f32.partialorder %v1396, 0.0
    %vm1430 = vcmp.gt.f32.partialorder %v1202, 0.0
    %vm1431 = vcmp.gt.f32.partialorder %v1398, 0.0
    %v1432 = vmul.f32 %v1165, 0.01
    %v1433 = vmul.f32 %v1361, 0.01
    %v1434 = vmul.f32 %v1167, 0.01
    %v1435 = vmul.f32 %v1363, 0.01
    %v1436 = vmul.f32 %v1170, 0.01
    %v1437 = vmul.f32 %v1366, 0.01
    %v1438 = vmul.f32 %v1172, 0.01
    %v1439 = vmul.f32 %v1368, 0.01
    %v1440 = vmul.f32 %v1175, 0.01
    %v1441 = vmul.f32 %v1371, 0.01
    %v1442 = vmul.f32 %v1177, 0.01
    %v1443 = vmul.f32 %v1373, 0.01
    %v1444 = vmul.f32 %v1180, 0.01
    %v1445 = vmul.f32 %v1376, 0.01
    %v1446 = vmul.f32 %v1182, 0.01
    %v1447 = vmul.f32 %v1378, 0.01
    %v1448 = vmul.f32 %v1185, 0.01
    %v1449 = vmul.f32 %v1381, 0.01
    %v1450 = vmul.f32 %v1187, 0.01
    %v1451 = vmul.f32 %v1383, 0.01
    %v1452 = vmul.f32 %v1190, 0.01
    %v1453 = vmul.f32 %v1386, 0.01
    %v1454 = vmul.f32 %v1192, 0.01
    %v1455 = vmul.f32 %v1388, 0.01
    %v1456 = vmul.f32 %v1195, 0.01
    %v1457 = vmul.f32 %v1391, 0.01
    %v1458 = vmul.f32 %v1197, 0.01
    %v1459 = vmul.f32 %v1393, 0.01
    %v1460 = vmul.f32 %v1200, 0.01
    %v1461 = vmul.f32 %v1396, 0.01
    %v1462 = vmul.f32 %v1202, 0.01
    %v1463 = vmul.f32 %v1398, 0.01
    %v1464 = vsel %vm1400, %v1165, %v1432
    %v1465 = vsel %vm1401, %v1361, %v1433
    %v1466 = vsel %vm1402, %v1167, %v1434
    %v1467 = vsel %vm1403, %v1363, %v1435
    %v1468 = vsel %vm1404, %v1170, %v1436
    %v1469 = vsel %vm1405, %v1366, %v1437
    %v1470 = vsel %vm1406, %v1172, %v1438
    %v1471 = vsel %vm1407, %v1368, %v1439
    %v1472 = vsel %vm1408, %v1175, %v1440
    %v1473 = vsel %vm1409, %v1371, %v1441
    %v1474 = vsel %vm1410, %v1177, %v1442
    %v1475 = vsel %vm1411, %v1373, %v1443
    %v1476 = vsel %vm1412, %v1180, %v1444
    %v1477 = vsel %vm1413, %v1376, %v1445
    %v1478 = vsel %vm1414, %v1182, %v1446
    %v1479 = vsel %vm1415, %v1378, %v1447
    %v1480 = vsel %vm1416, %v1185, %v1448
    %v1481 = vsel %vm1417, %v1381, %v1449
    %v1482 = vsel %vm1418, %v1187, %v1450
    %v1483 = vsel %vm1419, %v1383, %v1451
    %v1484 = vsel %vm1420, %v1190, %v1452
    %v1485 = vsel %vm1421, %v1386, %v1453
    %v1486 = vsel %vm1422, %v1192, %v1454
    %v1487 = vsel %vm1423, %v1388, %v1455
    %v1488 = vsel %vm1424, %v1195, %v1456
    %v1489 = vsel %vm1425, %v1391, %v1457
    %v1490 = vsel %vm1426, %v1197, %v1458
    %v1491 = vsel %vm1427, %v1393, %v1459
    %v1492 = vsel %vm1428, %v1200, %v1460
    %v1493 = vsel %vm1429, %v1396, %v1461
    %v1494 = vsel %vm1430, %v1202, %v1462
    %v1495 = vsel %vm1431, %v1398, %v1463
    %v1496 = vpack.c.bf16 %v1466, %v1464
    %v1497 = vpack.c.bf16 %v1467, %v1465
    %v1498 = vpack.c.bf16 %v1470, %v1468
    %v1499 = vpack.c.bf16 %v1471, %v1469
    %v1500 = vpack.c.bf16 %v1474, %v1472
    %v1501 = vpack.c.bf16 %v1475, %v1473
    %v1502 = vpack.c.bf16 %v1478, %v1476
    %v1503 = vpack.c.bf16 %v1479, %v1477
    %v1504 = vpack.c.bf16 %v1482, %v1480
    %v1505 = vpack.c.bf16 %v1483, %v1481
    %v1506 = vpack.c.bf16 %v1486, %v1484
    %v1507 = vpack.c.bf16 %v1487, %v1485
    %v1508 = vpack.c.bf16 %v1490, %v1488
    %v1509 = vpack.c.bf16 %v1491, %v1489
    %v1510 = vpack.c.bf16 %v1494, %v1492
    %v1511 = vpack.c.bf16 %v1495, %v1493
    %v1512 = vld [vmem:[#allocation4] sm:$0xf]
    %v1513 = vld [vmem:[#allocation4 + $0x4] sm:$0xf]
    %v1514 = vld [vmem:[#allocation4 + $0x8] sm:$0xf]
    %v1515 = vld [vmem:[#allocation4 + $0xc] sm:$0xf]
    %v1516 = vld [vmem:[#allocation4 + $0x10] sm:$0xf]
    %v1517 = vld [vmem:[#allocation4 + $0x14] sm:$0xf]
    %v1518 = vld [vmem:[#allocation4 + $0x18] sm:$0xf]
    %v1519 = vld [vmem:[#allocation4 + $0x1c] sm:$0xf]
    %v1520 = vld [vmem:[#allocation4 + $0x20] sm:$0xf]
    %v1521 = vld [vmem:[#allocation4 + $0x24] sm:$0xf]
    %v1522 = vld [vmem:[#allocation4 + $0x28] sm:$0xf]
    %v1523 = vld [vmem:[#allocation4 + $0x2c] sm:$0xf]
    %v1524 = vld [vmem:[#allocation4 + $0x30] sm:$0xf]
    %v1525 = vld [vmem:[#allocation4 + $0x34] sm:$0xf]
    %v1526 = vld [vmem:[#allocation4 + $0x38] sm:$0xf]
    %v1527 = vld [vmem:[#allocation4 + $0x3c] sm:$0xf]
    %v1528 = vld [vmem:[#allocation4 + $0x40] sm:$0xf]
    %v1529 = vld [vmem:[#allocation4 + $0x44] sm:$0xf]
    %v1530 = vld [vmem:[#allocation4 + $0x48] sm:$0xf]
    %v1531 = vld [vmem:[#allocation4 + $0x4c] sm:$0xf]
    %v1532 = vld [vmem:[#allocation4 + $0x50] sm:$0xf]
    %v1533 = vld [vmem:[#allocation4 + $0x54] sm:$0xf]
    %v1534 = vld [vmem:[#allocation4 + $0x58] sm:$0xf]
    %v1535 = vld [vmem:[#allocation4 + $0x5c] sm:$0xf]
    %v1536 = vld [vmem:[#allocation4 + $0x60] sm:$0xf]
    %v1537 = vld [vmem:[#allocation4 + $0x64] sm:$0xf]
    %v1538 = vld [vmem:[#allocation4 + $0x68] sm:$0xf]
    %v1539 = vld [vmem:[#allocation4 + $0x6c] sm:$0xf]
    %v1540 = vld [vmem:[#allocation4 + $0x70] sm:$0xf]
    %v1541 = vld [vmem:[#allocation4 + $0x74] sm:$0xf]
    %v1542 = vld [vmem:[#allocation4 + $0x78] sm:$0xf]
    %v1543 = vld [vmem:[#allocation4 + $0x7c] sm:$0xf]
    %v1544 = vld [vmem:[%s6] sm:$0x1]
    %v1546 = vperm.slane %v1544, 0
    %v1580 = vunpack.c.l.b16 %v1512
    %v1581 = vunpack.c.l.b16 %v1513
    %v1582 = vunpack.c.l.b16 %v1514
    %v1583 = vunpack.c.l.b16 %v1515
    %v1584 = vunpack.c.l.b16 %v1516
    %v1585 = vunpack.c.l.b16 %v1517
    %v1586 = vunpack.c.l.b16 %v1518
    %v1587 = vunpack.c.l.b16 %v1519
    %v1588 = vunpack.c.l.b16 %v1520
    %v1589 = vunpack.c.l.b16 %v1521
    %v1590 = vunpack.c.l.b16 %v1522
    %v1591 = vunpack.c.l.b16 %v1523
    %v1592 = vunpack.c.l.b16 %v1524
    %v1593 = vunpack.c.l.b16 %v1525
    %v1594 = vunpack.c.l.b16 %v1526
    %v1595 = vunpack.c.l.b16 %v1527
    %v1596 = vunpack.c.l.b16 %v1528
    %v1597 = vunpack.c.l.b16 %v1529
    %v1598 = vunpack.c.l.b16 %v1530
    %v1599 = vunpack.c.l.b16 %v1531
    %v1600 = vunpack.c.l.b16 %v1532
    %v1601 = vunpack.c.l.b16 %v1533
    %v1602 = vunpack.c.l.b16 %v1534
    %v1603 = vunpack.c.l.b16 %v1535
    %v1604 = vunpack.c.l.b16 %v1536
    %v1605 = vunpack.c.l.b16 %v1537
    %v1606 = vunpack.c.l.b16 %v1538
    %v1607 = vunpack.c.l.b16 %v1539
    %v1608 = vunpack.c.l.b16 %v1540
    %v1609 = vunpack.c.l.b16 %v1541
    %v1610 = vunpack.c.l.b16 %v1542
    %v1611 = vunpack.c.l.b16 %v1543
    %v1612 = vpack.c.b16 %v1581, %v1580
    %v1613 = vpack.c.b16 %v1583, %v1582
    %v1614 = vpack.c.b16 %v1585, %v1584
    %v1615 = vpack.c.b16 %v1587, %v1586
    %v1616 = vpack.c.b16 %v1589, %v1588
    %v1617 = vpack.c.b16 %v1591, %v1590
    %v1618 = vpack.c.b16 %v1593, %v1592
    %v1619 = vpack.c.b16 %v1595, %v1594
    %v1620 = vpack.c.b16 %v1597, %v1596
    %v1621 = vpack.c.b16 %v1599, %v1598
    %v1622 = vpack.c.b16 %v1601, %v1600
    %v1623 = vpack.c.b16 %v1603, %v1602
    %v1624 = vpack.c.b16 %v1605, %v1604
    %v1625 = vpack.c.b16 %v1607, %v1606
    %v1626 = vpack.c.b16 %v1609, %v1608
    %v1627 = vpack.c.b16 %v1611, %v1610
    %1644 = vmatpush.bf16.msra.mxu0 %v1619
    %1645 = vmatpush.bf16.msra.mxu0 %v1618
    %1646 = vmatpush.bf16.msra.mxu0 %v1617
    %1647 = vmatpush.bf16.msra.mxu0 %v1616
    %1648 = vmatpush.bf16.msra.mxu0 %v1615
    %1649 = vmatpush.bf16.msra.mxu0 %v1614
    %1650 = vmatpush.bf16.msra.mxu0 %v1613
    %1651 = vmatpush.bf16.msra.mxu0 %v1612
    %1652 = vmatmul.bf16.gmra.mxu0 %v1496
    %v1653 = vpop.f32.mrf.mxu0
    %v1654 = vadd.f32 %v1546, %v1653
    %v1655 = vpop.f32.mrf.mxu0
    %v1656 = vadd.f32 %v1546, %v1655
    %1657 = vmatmul.bf16.gmra.mxu0 %v1498
    %v1658 = vpop.f32.mrf.mxu0
    %v1659 = vadd.f32 %v1546, %v1658
    %v1660 = vpop.f32.mrf.mxu0
    %v1661 = vadd.f32 %v1546, %v1660
    %1662 = vmatmul.bf16.gmra.mxu0 %v1500
    %v1663 = vpop.f32.mrf.mxu0
    %v1664 = vadd.f32 %v1546, %v1663
    %v1665 = vpop.f32.mrf.mxu0
    %v1666 = vadd.f32 %v1546, %v1665
    %1667 = vmatmul.bf16.gmra.mxu0 %v1502
    %v1668 = vpop.f32.mrf.mxu0
    %v1669 = vadd.f32 %v1546, %v1668
    %v1670 = vpop.f32.mrf.mxu0
    %v1671 = vadd.f32 %v1546, %v1670
    %1672 = vmatmul.bf16.gmra.mxu0 %v1504
    %v1673 = vpop.f32.mrf.mxu0
    %v1674 = vadd.f32 %v1546, %v1673
    %v1675 = vpop.f32.mrf.mxu0
    %v1676 = vadd.f32 %v1546, %v1675
    %1677 = vmatmul.bf16.gmra.mxu0 %v1506
    %v1678 = vpop.f32.mrf.mxu0
    %v1679 = vadd.f32 %v1546, %v1678
    %v1680 = vpop.f32.mrf.mxu0
    %v1681 = vadd.f32 %v1546, %v1680
    %1682 = vmatmul.bf16.gmra.mxu0 %v1508
    %v1683 = vpop.f32.mrf.mxu0
    %v1684 = vadd.f32 %v1546, %v1683
    %v1685 = vpop.f32.mrf.mxu0
    %v1686 = vadd.f32 %v1546, %v1685
    %1687 = vmatmul.bf16.gmra.mxu0 %v1510
    %v1688 = vpop.f32.mrf.mxu0
    %v1689 = vadd.f32 %v1546, %v1688
    %v1690 = vpop.f32.mrf.mxu0
    %v1691 = vadd.f32 %v1546, %v1690
    %1692 = vdwg.mxu0
    %1693 = vmatpush.bf16.msra.mxu0 %v1627
    %1694 = vmatpush.bf16.msra.mxu0 %v1626
    %1695 = vmatpush.bf16.msra.mxu0 %v1625
    %1696 = vmatpush.bf16.msra.mxu0 %v1624
    %1697 = vmatpush.bf16.msra.mxu0 %v1623
    %1698 = vmatpush.bf16.msra.mxu0 %v1622
    %1699 = vmatpush.bf16.msra.mxu0 %v1621
    %1700 = vmatpush.bf16.msra.mxu0 %v1620
    %1701 = vmatmul.bf16.gmra.mxu0 %v1497
    %v1702 = vpop.f32.mrf.mxu0
    %v1703 = vadd.f32 %v1654, %v1702
    %v1704 = vpop.f32.mrf.mxu0
    %v1705 = vadd.f32 %v1656, %v1704
    %1706 = vmatmul.bf16.gmra.mxu0 %v1499
    %v1707 = vpop.f32.mrf.mxu0
    %v1708 = vadd.f32 %v1659, %v1707
    %v1709 = vpop.f32.mrf.mxu0
    %v1710 = vadd.f32 %v1661, %v1709
    %1711 = vmatmul.bf16.gmra.mxu0 %v1501
    %v1712 = vpop.f32.mrf.mxu0
    %v1713 = vadd.f32 %v1664, %v1712
    %v1714 = vpop.f32.mrf.mxu0
    %v1715 = vadd.f32 %v1666, %v1714
    %1716 = vmatmul.bf16.gmra.mxu0 %v1503
    %v1717 = vpop.f32.mrf.mxu0
    %v1718 = vadd.f32 %v1669, %v1717
    %v1719 = vpop.f32.mrf.mxu0
    %v1720 = vadd.f32 %v1671, %v1719
    %1721 = vmatmul.bf16.gmra.mxu0 %v1505
    %v1722 = vpop.f32.mrf.mxu0
    %v1723 = vadd.f32 %v1674, %v1722
    %v1724 = vpop.f32.mrf.mxu0
    %v1725 = vadd.f32 %v1676, %v1724
    %1726 = vmatmul.bf16.gmra.mxu0 %v1507
    %v1727 = vpop.f32.mrf.mxu0
    %v1728 = vadd.f32 %v1679, %v1727
    %v1729 = vpop.f32.mrf.mxu0
    %v1730 = vadd.f32 %v1681, %v1729
    %1731 = vmatmul.bf16.gmra.mxu0 %v1509
    %v1732 = vpop.f32.mrf.mxu0
    %v1733 = vadd.f32 %v1684, %v1732
    %v1734 = vpop.f32.mrf.mxu0
    %v1735 = vadd.f32 %v1686, %v1734
    %1736 = vmatmul.bf16.gmra.mxu0 %v1511
    %v1737 = vpop.f32.mrf.mxu0
    %v1738 = vadd.f32 %v1689, %v1737
    %v1739 = vpop.f32.mrf.mxu0
    %v1740 = vadd.f32 %v1691, %v1739
    %1741 = vdwg.mxu0
    %v1742 = vsub.f32 0.0, %v1703
    %v1743 = vsub.f32 0.0, %v1705
    %v1744 = vsub.f32 0.0, %v1708
    %v1745 = vsub.f32 0.0, %v1710
    %v1746 = vsub.f32 0.0, %v1713
    %v1747 = vsub.f32 0.0, %v1715
    %v1748 = vsub.f32 0.0, %v1718
    %v1749 = vsub.f32 0.0, %v1720
    %v1750 = vsub.f32 0.0, %v1723
    %v1751 = vsub.f32 0.0, %v1725
    %v1752 = vsub.f32 0.0, %v1728
    %v1753 = vsub.f32 0.0, %v1730
    %v1754 = vsub.f32 0.0, %v1733
    %v1755 = vsub.f32 0.0, %v1735
    %v1756 = vsub.f32 0.0, %v1738
    %v1757 = vsub.f32 0.0, %v1740
    %v1758 = vmul.f32 %v1742, 1.442695
    %v1759 = vpow.pop %v1758
    %v1760 = vmul.f32 %v1743, 1.442695
    %v1761 = vpow.pop %v1760
    %v1762 = vmul.f32 %v1744, 1.442695
    %v1763 = vpow.pop %v1762
    %v1764 = vmul.f32 %v1745, 1.442695
    %v1765 = vpow.pop %v1764
    %v1766 = vmul.f32 %v1746, 1.442695
    %v1767 = vpow.pop %v1766
    %v1768 = vmul.f32 %v1747, 1.442695
    %v1769 = vpow.pop %v1768
    %v1770 = vmul.f32 %v1748, 1.442695
    %v1771 = vpow.pop %v1770
    %v1772 = vmul.f32 %v1749, 1.442695
    %v1773 = vpow.pop %v1772
    %v1774 = vmul.f32 %v1750, 1.442695
    %v1775 = vpow.pop %v1774
    %v1776 = vmul.f32 %v1751, 1.442695
    %v1777 = vpow.pop %v1776
    %v1778 = vmul.f32 %v1752, 1.442695
    %v1779 = vpow.pop %v1778
    %v1780 = vmul.f32 %v1753, 1.442695
    %v1781 = vpow.pop %v1780
    %v1782 = vmul.f32 %v1754, 1.442695
    %v1783 = vpow.pop %v1782
    %v1784 = vmul.f32 %v1755, 1.442695
    %v1785 = vpow.pop %v1784
    %v1786 = vmul.f32 %v1756, 1.442695
    %v1787 = vpow.pop %v1786
    %v1788 = vmul.f32 %v1757, 1.442695
    %v1789 = vpow.pop %v1788
    %v1790 = vadd.f32 %v1759, 1.0
    %v1791 = vadd.f32 %v1761, 1.0
    %v1792 = vadd.f32 %v1763, 1.0
    %v1793 = vadd.f32 %v1765, 1.0
    %v1794 = vadd.f32 %v1767, 1.0
    %v1795 = vadd.f32 %v1769, 1.0
    %v1796 = vadd.f32 %v1771, 1.0
    %v1797 = vadd.f32 %v1773, 1.0
    %v1798 = vadd.f32 %v1775, 1.0
    %v1799 = vadd.f32 %v1777, 1.0
    %v1800 = vadd.f32 %v1779, 1.0
    %v1801 = vadd.f32 %v1781, 1.0
    %v1802 = vadd.f32 %v1783, 1.0
    %v1803 = vadd.f32 %v1785, 1.0
    %v1804 = vadd.f32 %v1787, 1.0
    %v1805 = vadd.f32 %v1789, 1.0
    %v1806 = vrcp.pop %v1790
    %v1807 = vrcp.pop %v1791
    %v1808 = vrcp.pop %v1792
    %v1809 = vrcp.pop %v1793
    %v1810 = vrcp.pop %v1794
    %v1811 = vrcp.pop %v1795
    %v1812 = vrcp.pop %v1796
    %v1813 = vrcp.pop %v1797
    %v1814 = vrcp.pop %v1798
    %v1815 = vrcp.pop %v1799
    %v1816 = vrcp.pop %v1800
    %v1817 = vrcp.pop %v1801
    %v1818 = vrcp.pop %v1802
    %v1819 = vrcp.pop %v1803
    %v1820 = vrcp.pop %v1804
    %v1821 = vrcp.pop %v1805
    %1822 = vst [vmem:[%s7] sm:$0xff] %v1806
    %1823 = vst [vmem:[%s7 + $0x8] sm:$0xff] %v1807
    %1824 = vst [vmem:[%s7 + $0x10] sm:$0xff] %v1808
    %1825 = vst [vmem:[%s7 + $0x18] sm:$0xff] %v1809
    %1826 = vst [vmem:[%s7 + $0x20] sm:$0xff] %v1810
    %1827 = vst [vmem:[%s7 + $0x28] sm:$0xff] %v1811
    %1828 = vst [vmem:[%s7 + $0x30] sm:$0xff] %v1812
    %1829 = vst [vmem:[%s7 + $0x38] sm:$0xff] %v1813
    %1830 = vst [vmem:[%s7 + $0x40] sm:$0xff] %v1814
    %1831 = vst [vmem:[%s7 + $0x48] sm:$0xff] %v1815
    %1832 = vst [vmem:[%s7 + $0x50] sm:$0xff] %v1816
    %1833 = vst [vmem:[%s7 + $0x58] sm:$0xff] %v1817
    %1834 = vst [vmem:[%s7 + $0x60] sm:$0xff] %v1818
    %1835 = vst [vmem:[%s7 + $0x68] sm:$0xff] %v1819
    %1836 = vst [vmem:[%s7 + $0x70] sm:$0xff] %v1820
    %1837 = vst [vmem:[%s7 + $0x78] sm:$0xff] %v1821
    // Predicated region
    $region38: #{binary_classifier_forward.1} parent=1 // pred_check
      _
    $region39: #{binary_classifier_forward.1} parent=1 // pred_check_branch
      %1839 = sbr.rel (0) target = $region41
    $region40: #{binary_classifier_forward.1} parent=1 // pred_region
      _
    $region41: #{binary_classifier_forward.1} parent=1 // pred_fallthru
      _
    // Predicated region
    $region42: #{binary_classifier_forward.1} parent=1 // pred_check
      _
    $region43: #{binary_classifier_forward.1} parent=1 // pred_check_branch
      %1841 = sbr.rel (0) target = $region45
    $region44: #{binary_classifier_forward.1} parent=1 // pred_region
      _
    $region45: #{binary_classifier_forward.1} parent=1 // pred_fallthru
      _
    %1842 = vsyncpa [#allocation3], 1
    %1843 = vsyncpa [#allocation5], 1

</llo_original>
